<compile_context>
chip_gen: v5e
topology: v5e:2x2
jax: 0.10.0
libtpu: 0.0.40
codegen_flags: <defaults>
</compile_context>

<pallas_src>
import functools

import jax
import jax.numpy as jnp
from jax.experimental import pallas as pl
from jax.experimental.pallas import tpu as pltpu

LANE = 128
SUBLANE_BF16 = 16  # packed sublane tile for bf16


def _round_up(x, m):
    return (x + m - 1) // m * m


def _choose_row_tile(h, w, max_m=2048):
    """Largest divisor TH of H with TH*W <= max_m and >= 2 row tiles per image."""
    best = 1
    for th in range(1, h + 1):
        if h % th == 0 and th * w <= max_m and (h // th) >= 2:
            best = th
    return best


# ----------------------------------------------------------------------------
# Kernel
# ----------------------------------------------------------------------------
def _conv_bn_silu_kernel(x_hbm, w_ref, b_ref, o_ref, xbuf, sem, *,
                         K, TH, W, pad, n_row_tiles):
    """One (batch, row-tile) step of fused conv + folded-BN + SiLU.

    x_hbm: (N, Hp, Wp, Cin_p)   bf16, padded input, left in HBM (pl.ANY)
    w_ref: (K*K*Cin_p, Cout_p)  bf16, im2col weights with BN scale folded in
    b_ref: (1, Cout_p)          f32,  folded BN bias
    o_ref: (1, TH*W, Cout_p)    bf16, lane-dense output row tile
    xbuf : (2, THp, Wp, Cin_p)  bf16, double-buffered halo row slab
    sem  : (2,) DMA semaphores
    """
    b = pl.program_id(0)
    i = pl.program_id(1)
    thp = TH + 2 * pad
    cin_p = xbuf.shape[-1]

    def slab_copy(batch, row_tile, slot):
        return pltpu.make_async_copy(
            x_hbm.at[batch, pl.ds(row_tile * TH, thp)],
            xbuf.at[slot],
            sem.at[slot])

    # Prime at the first row tile of each batch element, then keep one slab in
    # flight: prefetch row tile i+1 while computing on row tile i.
    @pl.when(i == 0)
    def _():
        slab_copy(b, 0, 0).start()

    if n_row_tiles > 1:
        @pl.when(i + 1 < n_row_tiles)
        def _():
            slab_copy(b, i + 1, (i + 1) % 2).start()

    slot = i % 2
    slab_copy(b, i, slot).wait()

    xs = xbuf[slot]                                   # (THp, Wp, Cin_p) bf16

    # K*K taps -> K*K MXU dots (each Cin_p-deep), accumulated in f32 vregs.
    # kh taps are static slices along the major (row) axis; only the K kw
    # shifts touch the sublane axis.
    # TODO(synk): route the kw shifts through pltpu.roll (XLU slot) to avoid
    # the sublane-offset relayout on the load path.
    acc = None
    for kw in range(K):
        x_kw = xs[:, kw:kw + W, :]                    # (THp, W, Cin_p)
        for kh in range(K):
            tap = x_kw[kh:kh + TH].reshape(TH * W, cin_p)
            r0 = (kh * K + kw) * cin_p
            part = jnp.dot(tap, w_ref[r0:r0 + cin_p, :],
                           preferred_element_type=jnp.float32)
            acc = part if acc is None else acc + part

    # Epilogue: folded-BN bias + SiLU in f32; lane-dense bf16 store.
    y = acc + b_ref[...]
    y = y * jax.nn.sigmoid(y)
    o_ref[0] = y.astype(o_ref.dtype)


# ----------------------------------------------------------------------------
# Wrapper
# ----------------------------------------------------------------------------
def conv_bn_silu_nhwc(x_nhwc, w_kkio, gamma, beta, mean, var, *, eps=1e-3):
    """act(bn(conv(x))) for NHWC input; conv is k x k, stride 1, same padding."""
    n, h, w, cin = x_nhwc.shape
    k = int(w_kkio.shape[0])
    cout = int(w_kkio.shape[-1])
    assert w_kkio.shape[:3] == (k, k, cin)
    assert k % 2 == 1, "only odd kernel sizes (autopad 'same') are supported"
    # TODO(synk): stride > 1, groups > 1, dilation > 1 are not implemented.
    pad = k // 2

    cin_p = _round_up(max(cin, LANE), LANE)
    cout_p = _round_up(max(cout, LANE), LANE)
    # TODO(synk): for tiny Cin (first conv) pack the reduction dim as K*K*Cin
    # padded to 128 instead of padding Cin itself to 128 per tap.
    wp_cols = _round_up(w + 2 * pad, SUBLANE_BF16)
    th = _choose_row_tile(h, w)
    thp = th + 2 * pad
    n_row_tiles = h // th

    # Fused halo/channel pad + bf16 cast (single pass over x).
    xp = jnp.pad(
        x_nhwc.astype(jnp.bfloat16),
        ((0, 0), (pad, pad), (pad, wp_cols - w - pad), (0, cin_p - cin)))

    # Fold BatchNorm (eval) into the conv: scale into the weights, bias kept.
    scale = gamma / jnp.sqrt(var + eps)
    bias = beta - mean * scale
    w_folded = w_kkio * scale[None, None, None, :]
    w_pad = jnp.pad(w_folded,
                    ((0, 0), (0, 0), (0, cin_p - cin), (0, cout_p - cout)))
    w2 = w_pad.reshape(k * k * cin_p, cout_p).astype(jnp.bfloat16)
    b2 = jnp.pad(bias, (0, cout_p - cout)).reshape(1, cout_p).astype(jnp.float32)

    kernel = functools.partial(_conv_bn_silu_kernel, K=k, TH=th, W=w, pad=pad,
                               n_row_tiles=n_row_tiles)

    # VMEM budget from the actual blocks (double-buffered) + headroom,
    # capped at v7x's 64 MiB physical VMEM per TensorCore.
    slab_b = thp * wp_cols * cin_p * 2
    w_b = k * k * cin_p * cout_p * 2
    out_b = th * w * cout_p * 2
    acc_b = th * w * cout_p * 4 + 2 * th * w * cin_p * 2
    vmem_est = 2 * slab_b + 2 * w_b + 2 * out_b + 2 * cout_p * 4 * 2 + acc_b
    vmem_limit = int(min(max(4 * vmem_est, 32 * 1024 * 1024), 64 * 1024 * 1024))

    cost = pl.CostEstimate(
        flops=2 * n * h * w * k * k * cin_p * cout_p,
        transcendentals=n * h * w * cout_p,
        bytes_accessed=(xp.size * xp.dtype.itemsize
                        + w2.size * w2.dtype.itemsize
                        + b2.size * 4
                        + n * h * w * cout_p * 2),
    )

    out = pl.pallas_call(
        kernel,
        out_shape=jax.ShapeDtypeStruct((n, h * w, cout_p), jnp.bfloat16),
        grid_spec=pltpu.PrefetchScalarGridSpec(
            num_scalar_prefetch=0,
            grid=(n, n_row_tiles),
            in_specs=[
                pl.BlockSpec(memory_space=pl.ANY),               # x stays in HBM
                pl.BlockSpec((k * k * cin_p, cout_p), lambda b, i: (0, 0)),
                pl.BlockSpec((1, cout_p), lambda b, i: (0, 0)),
            ],
            out_specs=pl.BlockSpec((1, th * w, cout_p), lambda b, i: (b, i, 0)),
            scratch_shapes=[
                pltpu.VMEM((2, thp, wp_cols, cin_p), jnp.bfloat16),
                pltpu.SemaphoreType.DMA((2,)),
            ],
        ),
        compiler_params=pltpu.CompilerParams(
            dimension_semantics=("parallel", "arbitrary"),
            vmem_limit_bytes=vmem_limit,
        ),
        cost_estimate=cost,
    )(xp, w2, b2)

    # Drop channel padding, restore spatial shape.
    return out[:, :, :cout].reshape(n, h, w, cout)


@jax.jit
def conv_forward(x_nchw, params):
    """PyTorch Conv.forward semantics: SiLU(BN(Conv2d(x))) in NCHW layout."""
    # NOTE: in a multi-layer network keep activations as lane-dense bf16 NHWC
    # between layers instead of transposing / recasting around every conv.
    x = jnp.transpose(x_nchw, (0, 2, 3, 1))          # NCHW -> NHWC
    y = conv_bn_silu_nhwc(x, params["w"], params["gamma"], params["beta"],
                          params["mean"], params["var"], eps=1e-3)
    return jnp.transpose(y, (0, 3, 1, 2)).astype(x_nchw.dtype)   # NHWC -> NCHW


# ----------------------------------------------------------------------------
# Parameters + pure-JAX reference
# ----------------------------------------------------------------------------
def init_conv_params(key, c1, c2, k=3):
    keys = jax.random.split(key, 5)
    w_oikk = 0.1 * jax.random.normal(keys[0], (c2, c1, k, k), jnp.float32)
    w_kkio = jnp.transpose(w_oikk, (2, 3, 1, 0))     # (K, K, Cin, Cout)
    gamma = 1.0 + 0.1 * jax.random.normal(keys[1], (c2,), jnp.float32)
    beta = 0.05 * jax.random.normal(keys[2], (c2,), jnp.float32)
    mean = 0.1 * jax.random.normal(keys[3], (c2,), jnp.float32)
    var = jax.random.uniform(keys[4], (c2,), jnp.float32, minval=0.5, maxval=1.5)
    return dict(w=w_kkio, gamma=gamma, beta=beta, mean=mean, var=var)


def conv_reference(x_nchw, params, eps=1e-3):
    w_oihw = jnp.transpose(params["w"], (3, 2, 0, 1))
    y = jax.lax.conv_general_dilated(
        x_nchw, w_oihw, window_strides=(1, 1), padding="SAME",
        dimension_numbers=("NCHW", "OIHW", "NCHW"))
    scale = params["gamma"] / jnp.sqrt(params["var"] + eps)
    bias = params["beta"] - params["mean"] * scale
    y = y * scale.reshape(1, -1, 1, 1) + bias.reshape(1, -1, 1, 1)
    return y * jax.nn.sigmoid(y)


# ----------------------------------------------------------------------------
if __name__ == "__main__":
    key = jax.random.PRNGKey(0)
    k_x, k_p = jax.random.split(key)

    N, C1, C2, H, W, K = 2, 4, 4, 16, 16, 3
    x = jax.random.normal(k_x, (N, C1, H, W), jnp.float32)
    params = init_conv_params(k_p, C1, C2, k=K)

    out = conv_forward(x, params)
    jax.block_until_ready(out)
    assert out.shape == (N, C2, H, W), out.shape

    # Numerical sanity check vs plain-JAX reference (loose tol: bf16 path).
    ref = conv_reference(x, params)
    err = float(jnp.max(jnp.abs(out.astype(jnp.float32) - ref)))
    assert err < 1e-1, f"max abs error too large: {err}"

    print("KERNEL_OK")
</pallas_src>

<mosaic_0001>
module attributes {stable_mosaic.version = 11 : i64} {
  func.func @_conv_bn_silu_kernel(%arg0: i32, %arg1: i32, %arg2: memref<2x18x32x128xbf16, #tpu.memory_space<any>>, %arg3: memref<1152x128xbf16, #tpu.memory_space<vmem>>, %arg4: memref<1x128xf32, #tpu.memory_space<vmem>>, %arg5: memref<1x128x128xbf16, #tpu.memory_space<vmem>>, %arg6: memref<2x10x32x128xbf16, #tpu.memory_space<vmem>>, %arg7: memref<2x!tpu.dma_semaphore, #tpu.memory_space<semaphore_mem>>) attributes {dimension_semantics = [#tpu.dimension_semantics<parallel>, #tpu.dimension_semantics<arbitrary>], iteration_bounds = array<i64: 2, 2>, scalar_prefetch = 0 : i64, scratch_operands = 2 : i64, tpu.core_type = #tpu.core_type<tc>, window_params = [{}, {pipeline_mode = #tpu.pipeline_mode<synchronous>, transform_indices = @transform_1, window_bounds = array<i64: 1152, 128>}, {pipeline_mode = #tpu.pipeline_mode<synchronous>, transform_indices = @transform_2, window_bounds = array<i64: 1, 128>}, {transform_indices = @transform_3, window_bounds = array<i64: 1, 128, 128>}]} {
    %c0_i32 = arith.constant 0 : i32
    %0 = arith.cmpi eq, %arg1, %c0_i32 : i32
    %1 = arith.extui %0 : i1 to i32
    %c0_i32_0 = arith.constant 0 : i32
    %2 = arith.cmpi ne, %1, %c0_i32_0 : i32
    scf.if %2 {
      %c0_i32_39 = arith.constant 0 : i32
      %c0_i32_40 = arith.constant 0 : i32
      %c0_i32_41 = arith.constant 0 : i32
      %c0_i32_42 = arith.constant 0 : i32
      %c0_i32_43 = arith.constant 0 : i32
      %87 = tpu.memref_slice %arg2[%arg0, %c0_i32_41, %c0_i32_42, %c0_i32_43] : memref<2x18x32x128xbf16, #tpu.memory_space<any>> -> memref<1x10x32x128xbf16, #tpu.memory_space<any>>
      %88 = tpu.memref_squeeze %87 : memref<1x10x32x128xbf16, #tpu.memory_space<any>> -> memref<10x32x128xbf16, #tpu.memory_space<any>>
      %c0_i32_44 = arith.constant 0 : i32
      %c0_i32_45 = arith.constant 0 : i32
      %c0_i32_46 = arith.constant 0 : i32
      %89 = tpu.memref_slice %arg6[%c0_i32_39, %c0_i32_44, %c0_i32_45, %c0_i32_46] : memref<2x10x32x128xbf16, #tpu.memory_space<vmem>> -> memref<1x10x32x128xbf16, #tpu.memory_space<vmem>>
      %90 = tpu.memref_squeeze %89 : memref<1x10x32x128xbf16, #tpu.memory_space<vmem>> -> memref<10x32x128xbf16, #tpu.memory_space<vmem>>
      %91 = tpu.memref_slice %arg7[%c0_i32_40] : memref<2x!tpu.dma_semaphore, #tpu.memory_space<semaphore_mem>> -> memref<1x!tpu.dma_semaphore, #tpu.memory_space<semaphore_mem>>
      %92 = tpu.memref_squeeze %91 : memref<1x!tpu.dma_semaphore, #tpu.memory_space<semaphore_mem>> -> memref<!tpu.dma_semaphore, #tpu.memory_space<semaphore_mem>>
      tpu.enqueue_dma source(%88 : memref<10x32x128xbf16, #tpu.memory_space<any>>) target(%90 : memref<10x32x128xbf16, #tpu.memory_space<vmem>>) target_semaphore(%92 : memref<!tpu.dma_semaphore, #tpu.memory_space<semaphore_mem>>)
    } else {
    }
    %c1_i32 = arith.constant 1 : i32
    %3 = arith.addi %arg1, %c1_i32 : i32
    %c2_i32 = arith.constant 2 : i32
    %4 = arith.cmpi slt, %3, %c2_i32 : i32
    %5 = arith.extui %4 : i1 to i32
    %c0_i32_1 = arith.constant 0 : i32
    %6 = arith.cmpi ne, %5, %c0_i32_1 : i32
    scf.if %6 {
      %c1_i32_39 = arith.constant 1 : i32
      %87 = arith.addi %arg1, %c1_i32_39 : i32
      %c1_i32_40 = arith.constant 1 : i32
      %88 = arith.addi %arg1, %c1_i32_40 : i32
      %c2_i32_41 = arith.constant 2 : i32
      %c0_i32_42 = arith.constant 0 : i32
      %89 = arith.cmpi eq, %c2_i32_41, %c0_i32_42 : i32
      %c1_i32_43 = arith.constant 1 : i32
      %90 = arith.select %89, %c1_i32_43, %c2_i32_41 : i32
      %91 = arith.remsi %88, %90 : i32
      %c0_i32_44 = arith.constant 0 : i32
      %92 = arith.cmpi ne, %91, %c0_i32_44 : i32
      %c0_i32_45 = arith.constant 0 : i32
      %93 = arith.cmpi slt, %91, %c0_i32_45 : i32
      %c0_i32_46 = arith.constant 0 : i32
      %94 = arith.cmpi slt, %90, %c0_i32_46 : i32
      %95 = arith.xori %93, %94 : i1
      %96 = arith.andi %95, %92 : i1
      %97 = arith.addi %91, %90 : i32
      %98 = arith.select %96, %97, %91 : i32
      %c8_i32_47 = arith.constant 8 : i32
      %99 = arith.muli %87, %c8_i32_47 : i32
      %c0_i32_48 = arith.constant 0 : i32
      %c0_i32_49 = arith.constant 0 : i32
      %100 = tpu.memref_slice %arg2[%arg0, %99, %c0_i32_48, %c0_i32_49] : memref<2x18x32x128xbf16, #tpu.memory_space<any>> -> memref<1x10x32x128xbf16, #tpu.memory_space<any>>
      %101 = tpu.memref_squeeze %100 : memref<1x10x32x128xbf16, #tpu.memory_space<any>> -> memref<10x32x128xbf16, #tpu.memory_space<any>>
      %c0_i32_50 = arith.constant 0 : i32
      %c0_i32_51 = arith.constant 0 : i32
      %c0_i32_52 = arith.constant 0 : i32
      %102 = tpu.memref_slice %arg6[%98, %c0_i32_50, %c0_i32_51, %c0_i32_52] : memref<2x10x32x128xbf16, #tpu.memory_space<vmem>> -> memref<1x10x32x128xbf16, #tpu.memory_space<vmem>>
      %103 = tpu.memref_squeeze %102 : memref<1x10x32x128xbf16, #tpu.memory_space<vmem>> -> memref<10x32x128xbf16, #tpu.memory_space<vmem>>
      %104 = tpu.memref_slice %arg7[%98] : memref<2x!tpu.dma_semaphore, #tpu.memory_space<semaphore_mem>> -> memref<1x!tpu.dma_semaphore, #tpu.memory_space<semaphore_mem>>
      %105 = tpu.memref_squeeze %104 : memref<1x!tpu.dma_semaphore, #tpu.memory_space<semaphore_mem>> -> memref<!tpu.dma_semaphore, #tpu.memory_space<semaphore_mem>>
      tpu.enqueue_dma source(%101 : memref<10x32x128xbf16, #tpu.memory_space<any>>) target(%103 : memref<10x32x128xbf16, #tpu.memory_space<vmem>>) target_semaphore(%105 : memref<!tpu.dma_semaphore, #tpu.memory_space<semaphore_mem>>)
    } else {
    }
    %c2_i32_2 = arith.constant 2 : i32
    %c0_i32_3 = arith.constant 0 : i32
    %7 = arith.cmpi eq, %c2_i32_2, %c0_i32_3 : i32
    %c1_i32_4 = arith.constant 1 : i32
    %8 = arith.select %7, %c1_i32_4, %c2_i32_2 : i32
    %9 = arith.remsi %arg1, %8 : i32
    %c0_i32_5 = arith.constant 0 : i32
    %10 = arith.cmpi ne, %9, %c0_i32_5 : i32
    %c0_i32_6 = arith.constant 0 : i32
    %11 = arith.cmpi slt, %9, %c0_i32_6 : i32
    %c0_i32_7 = arith.constant 0 : i32
    %12 = arith.cmpi slt, %8, %c0_i32_7 : i32
    %13 = arith.xori %11, %12 : i1
    %14 = arith.andi %13, %10 : i1
    %15 = arith.addi %9, %8 : i32
    %16 = arith.select %14, %15, %9 : i32
    %c8_i32 = arith.constant 8 : i32
    %17 = arith.muli %arg1, %c8_i32 : i32
    %c0_i32_8 = arith.constant 0 : i32
    %c0_i32_9 = arith.constant 0 : i32
    %18 = tpu.memref_slice %arg2[%arg0, %17, %c0_i32_8, %c0_i32_9] : memref<2x18x32x128xbf16, #tpu.memory_space<any>> -> memref<1x10x32x128xbf16, #tpu.memory_space<any>>
    %19 = tpu.memref_squeeze %18 : memref<1x10x32x128xbf16, #tpu.memory_space<any>> -> memref<10x32x128xbf16, #tpu.memory_space<any>>
    %c0_i32_10 = arith.constant 0 : i32
    %c0_i32_11 = arith.constant 0 : i32
    %c0_i32_12 = arith.constant 0 : i32
    %20 = tpu.memref_slice %arg6[%16, %c0_i32_10, %c0_i32_11, %c0_i32_12] : memref<2x10x32x128xbf16, #tpu.memory_space<vmem>> -> memref<1x10x32x128xbf16, #tpu.memory_space<vmem>>
    %21 = tpu.memref_squeeze %20 : memref<1x10x32x128xbf16, #tpu.memory_space<vmem>> -> memref<10x32x128xbf16, #tpu.memory_space<vmem>>
    %22 = tpu.memref_slice %arg7[%16] : memref<2x!tpu.dma_semaphore, #tpu.memory_space<semaphore_mem>> -> memref<1x!tpu.dma_semaphore, #tpu.memory_space<semaphore_mem>>
    %23 = tpu.memref_squeeze %22 : memref<1x!tpu.dma_semaphore, #tpu.memory_space<semaphore_mem>> -> memref<!tpu.dma_semaphore, #tpu.memory_space<semaphore_mem>>
    tpu.wait_dma2 semaphore(%23 : memref<!tpu.dma_semaphore, #tpu.memory_space<semaphore_mem>>) src(%19 : memref<10x32x128xbf16, #tpu.memory_space<any>>) dst(%21 : memref<10x32x128xbf16, #tpu.memory_space<vmem>>)
    %24 = arith.index_cast %16 : i32 to index
    %c0 = arith.constant 0 : index
    %c0_13 = arith.constant 0 : index
    %c0_14 = arith.constant 0 : index
    %25 = vector.load %arg6[%24, %c0, %c0_13, %c0_14] : memref<2x10x32x128xbf16, #tpu.memory_space<vmem>>, vector<1x10x32x128xbf16>
    %26 = vector.shape_cast %25 : vector<1x10x32x128xbf16> to vector<10x32x128xbf16>
    %27 = vector.extract_strided_slice %26 {offsets = [0, 0, 0], sizes = [10, 16, 128], strides = [1, 1, 1]} : vector<10x32x128xbf16> to vector<10x16x128xbf16>
    %28 = vector.extract_strided_slice %27 {offsets = [0, 0, 0], sizes = [8, 16, 128], strides = [1, 1, 1]} : vector<10x16x128xbf16> to vector<8x16x128xbf16>
    %29 = vector.shape_cast %28 : vector<8x16x128xbf16> to vector<128x128xbf16>
    %c0_15 = arith.constant 0 : index
    %c0_16 = arith.constant 0 : index
    %30 = vector.load %arg3[%c0_15, %c0_16] : memref<1152x128xbf16, #tpu.memory_space<vmem>>, vector<128x128xbf16>
    %cst = arith.constant dense<0.000000e+00> : vector<128x128xf32>
    %31 = tpu.matmul %29, %30, %cst {dimension_numbers = #tpu.dot_dimension_numbers<[1], [0], [0], [1], [0, 0, 1, 1], [], []>} : vector<128x128xbf16>, vector<128x128xbf16>, vector<128x128xf32> -> vector<128x128xf32>
    %32 = vector.extract_strided_slice %27 {offsets = [1, 0, 0], sizes = [8, 16, 128], strides = [1, 1, 1]} : vector<10x16x128xbf16> to vector<8x16x128xbf16>
    %33 = vector.shape_cast %32 : vector<8x16x128xbf16> to vector<128x128xbf16>
    %c384 = arith.constant 384 : index
    %c0_17 = arith.constant 0 : index
    %34 = vector.load %arg3[%c384, %c0_17] : memref<1152x128xbf16, #tpu.memory_space<vmem>>, vector<128x128xbf16>
    %cst_18 = arith.constant dense<0.000000e+00> : vector<128x128xf32>
    %35 = tpu.matmul %33, %34, %cst_18 {dimension_numbers = #tpu.dot_dimension_numbers<[1], [0], [0], [1], [0, 0, 1, 1], [], []>} : vector<128x128xbf16>, vector<128x128xbf16>, vector<128x128xf32> -> vector<128x128xf32>
    %36 = arith.addf %31, %35 : vector<128x128xf32>
    %37 = vector.extract_strided_slice %27 {offsets = [2, 0, 0], sizes = [8, 16, 128], strides = [1, 1, 1]} : vector<10x16x128xbf16> to vector<8x16x128xbf16>
    %38 = vector.shape_cast %37 : vector<8x16x128xbf16> to vector<128x128xbf16>
    %c768 = arith.constant 768 : index
    %c0_19 = arith.constant 0 : index
    %39 = vector.load %arg3[%c768, %c0_19] : memref<1152x128xbf16, #tpu.memory_space<vmem>>, vector<128x128xbf16>
    %cst_20 = arith.constant dense<0.000000e+00> : vector<128x128xf32>
    %40 = tpu.matmul %38, %39, %cst_20 {dimension_numbers = #tpu.dot_dimension_numbers<[1], [0], [0], [1], [0, 0, 1, 1], [], []>} : vector<128x128xbf16>, vector<128x128xbf16>, vector<128x128xf32> -> vector<128x128xf32>
    %41 = arith.addf %36, %40 : vector<128x128xf32>
    %42 = vector.extract_strided_slice %26 {offsets = [0, 1, 0], sizes = [10, 16, 128], strides = [1, 1, 1]} : vector<10x32x128xbf16> to vector<10x16x128xbf16>
    %43 = vector.extract_strided_slice %42 {offsets = [0, 0, 0], sizes = [8, 16, 128], strides = [1, 1, 1]} : vector<10x16x128xbf16> to vector<8x16x128xbf16>
    %44 = vector.shape_cast %43 : vector<8x16x128xbf16> to vector<128x128xbf16>
    %c128 = arith.constant 128 : index
    %c0_21 = arith.constant 0 : index
    %45 = vector.load %arg3[%c128, %c0_21] : memref<1152x128xbf16, #tpu.memory_space<vmem>>, vector<128x128xbf16>
    %cst_22 = arith.constant dense<0.000000e+00> : vector<128x128xf32>
    %46 = tpu.matmul %44, %45, %cst_22 {dimension_numbers = #tpu.dot_dimension_numbers<[1], [0], [0], [1], [0, 0, 1, 1], [], []>} : vector<128x128xbf16>, vector<128x128xbf16>, vector<128x128xf32> -> vector<128x128xf32>
    %47 = arith.addf %41, %46 : vector<128x128xf32>
    %48 = vector.extract_strided_slice %42 {offsets = [1, 0, 0], sizes = [8, 16, 128], strides = [1, 1, 1]} : vector<10x16x128xbf16> to vector<8x16x128xbf16>
    %49 = vector.shape_cast %48 : vector<8x16x128xbf16> to vector<128x128xbf16>
    %c512 = arith.constant 512 : index
    %c0_23 = arith.constant 0 : index
    %50 = vector.load %arg3[%c512, %c0_23] : memref<1152x128xbf16, #tpu.memory_space<vmem>>, vector<128x128xbf16>
    %cst_24 = arith.constant dense<0.000000e+00> : vector<128x128xf32>
    %51 = tpu.matmul %49, %50, %cst_24 {dimension_numbers = #tpu.dot_dimension_numbers<[1], [0], [0], [1], [0, 0, 1, 1], [], []>} : vector<128x128xbf16>, vector<128x128xbf16>, vector<128x128xf32> -> vector<128x128xf32>
    %52 = arith.addf %47, %51 : vector<128x128xf32>
    %53 = vector.extract_strided_slice %42 {offsets = [2, 0, 0], sizes = [8, 16, 128], strides = [1, 1, 1]} : vector<10x16x128xbf16> to vector<8x16x128xbf16>
    %54 = vector.shape_cast %53 : vector<8x16x128xbf16> to vector<128x128xbf16>
    %c896 = arith.constant 896 : index
    %c0_25 = arith.constant 0 : index
    %55 = vector.load %arg3[%c896, %c0_25] : memref<1152x128xbf16, #tpu.memory_space<vmem>>, vector<128x128xbf16>
    %cst_26 = arith.constant dense<0.000000e+00> : vector<128x128xf32>
    %56 = tpu.matmul %54, %55, %cst_26 {dimension_numbers = #tpu.dot_dimension_numbers<[1], [0], [0], [1], [0, 0, 1, 1], [], []>} : vector<128x128xbf16>, vector<128x128xbf16>, vector<128x128xf32> -> vector<128x128xf32>
    %57 = arith.addf %52, %56 : vector<128x128xf32>
    %58 = vector.extract_strided_slice %26 {offsets = [0, 2, 0], sizes = [10, 16, 128], strides = [1, 1, 1]} : vector<10x32x128xbf16> to vector<10x16x128xbf16>
    %59 = vector.extract_strided_slice %58 {offsets = [0, 0, 0], sizes = [8, 16, 128], strides = [1, 1, 1]} : vector<10x16x128xbf16> to vector<8x16x128xbf16>
    %60 = vector.shape_cast %59 : vector<8x16x128xbf16> to vector<128x128xbf16>
    %c256 = arith.constant 256 : index
    %c0_27 = arith.constant 0 : index
    %61 = vector.load %arg3[%c256, %c0_27] : memref<1152x128xbf16, #tpu.memory_space<vmem>>, vector<128x128xbf16>
    %cst_28 = arith.constant dense<0.000000e+00> : vector<128x128xf32>
    %62 = tpu.matmul %60, %61, %cst_28 {dimension_numbers = #tpu.dot_dimension_numbers<[1], [0], [0], [1], [0, 0, 1, 1], [], []>} : vector<128x128xbf16>, vector<128x128xbf16>, vector<128x128xf32> -> vector<128x128xf32>
    %63 = arith.addf %57, %62 : vector<128x128xf32>
    %64 = vector.extract_strided_slice %58 {offsets = [1, 0, 0], sizes = [8, 16, 128], strides = [1, 1, 1]} : vector<10x16x128xbf16> to vector<8x16x128xbf16>
    %65 = vector.shape_cast %64 : vector<8x16x128xbf16> to vector<128x128xbf16>
    %c640 = arith.constant 640 : index
    %c0_29 = arith.constant 0 : index
    %66 = vector.load %arg3[%c640, %c0_29] : memref<1152x128xbf16, #tpu.memory_space<vmem>>, vector<128x128xbf16>
    %cst_30 = arith.constant dense<0.000000e+00> : vector<128x128xf32>
    %67 = tpu.matmul %65, %66, %cst_30 {dimension_numbers = #tpu.dot_dimension_numbers<[1], [0], [0], [1], [0, 0, 1, 1], [], []>} : vector<128x128xbf16>, vector<128x128xbf16>, vector<128x128xf32> -> vector<128x128xf32>
    %68 = arith.addf %63, %67 : vector<128x128xf32>
    %69 = vector.extract_strided_slice %58 {offsets = [2, 0, 0], sizes = [8, 16, 128], strides = [1, 1, 1]} : vector<10x16x128xbf16> to vector<8x16x128xbf16>
    %70 = vector.shape_cast %69 : vector<8x16x128xbf16> to vector<128x128xbf16>
    %c1024 = arith.constant 1024 : index
    %c0_31 = arith.constant 0 : index
    %71 = vector.load %arg3[%c1024, %c0_31] : memref<1152x128xbf16, #tpu.memory_space<vmem>>, vector<128x128xbf16>
    %cst_32 = arith.constant dense<0.000000e+00> : vector<128x128xf32>
    %72 = tpu.matmul %70, %71, %cst_32 {dimension_numbers = #tpu.dot_dimension_numbers<[1], [0], [0], [1], [0, 0, 1, 1], [], []>} : vector<128x128xbf16>, vector<128x128xbf16>, vector<128x128xf32> -> vector<128x128xf32>
    %73 = arith.addf %68, %72 : vector<128x128xf32>
    %c0_33 = arith.constant 0 : index
    %c0_34 = arith.constant 0 : index
    %74 = vector.load %arg4[%c0_33, %c0_34] : memref<1x128xf32, #tpu.memory_space<vmem>>, vector<1x128xf32>
    %75 = vector.broadcast %74 : vector<1x128xf32> to vector<128x128xf32>
    %76 = arith.addf %73, %75 : vector<128x128xf32>
    %77 = arith.negf %76 : vector<128x128xf32>
    %78 = math.exp %77 : vector<128x128xf32>
    %cst_35 = arith.constant 1.000000e+00 : f32
    %79 = vector.broadcast %cst_35 : f32 to vector<128x128xf32>
    %80 = arith.addf %79, %78 : vector<128x128xf32>
    %81 = arith.divf %79, %80 : vector<128x128xf32>
    %82 = arith.mulf %76, %81 : vector<128x128xf32>
    %83 = arith.truncf %82 : vector<128x128xf32> to vector<128x128xbf16>
    %c0_36 = arith.constant 0 : index
    %c0_37 = arith.constant 0 : index
    %c0_38 = arith.constant 0 : index
    %84 = vector.load %arg5[%c0_36, %c0_37, %c0_38] : memref<1x128x128xbf16, #tpu.memory_space<vmem>>, vector<1x128x128xbf16>
    %85 = vector.shape_cast %84 : vector<1x128x128xbf16> to vector<128x128xbf16>
    %86 = vector.shape_cast %83 : vector<128x128xbf16> to vector<1x128x128xbf16>
    tpu.vector_store %arg5[%c0_36, %c0_37, %c0_38], %86 {strides = array<i32>} : memref<1x128x128xbf16, #tpu.memory_space<vmem>>, vector<1x128x128xbf16>,
    return
  }
  func.func @transform_1(%arg0: i32, %arg1: i32) -> (i32, i32) {
    %c0_i32 = arith.constant 0 : i32
    %c0_i32_0 = arith.constant 0 : i32
    %c0_i32_1 = arith.constant 0 : i32
    return %c0_i32, %c0_i32_0 : i32, i32
  }
  func.func @transform_2(%arg0: i32, %arg1: i32) -> (i32, i32) {
    %c0_i32 = arith.constant 0 : i32
    %c0_i32_0 = arith.constant 0 : i32
    %c0_i32_1 = arith.constant 0 : i32
    return %c0_i32, %c0_i32_0 : i32, i32
  }
  func.func @transform_3(%arg0: i32, %arg1: i32) -> (i32, i32, i32) {
    %c0_i32 = arith.constant 0 : i32
    %c0_i32_0 = arith.constant 0 : i32
    return %arg0, %arg1, %c0_i32 : i32, i32, i32
  }
}

</mosaic_0001>

<llo_original>
// kernel: conv_forward.1
$region0: #{conv_forward.1}
  #allocation0 [shape = 'u32[]', space=smem, size = 0x4, offset = 0x4, fixed_abs, tag = 'smem constant byte address 0x4 - core index']
  #allocation1 [shape = 'u32[72,128]{1,0:T(1,128)}', space=vmem, size = 0x9000, scoped, tag = 'internal scratch']
  #allocation2 [shape = 'bf16[2,10,32,128]{3,2,1,0:T(8,128)(2,1)}', space=vmem, size = 0x28000, scoped, tag = 'scratch operand']
  #allocation3 [shape = 's32[2]{0}', space=sflag, size = 0x8, scoped, tag = 'scratch operand']
  #allocation4 [shape = 's32[]', space=sflag, size = 0x4, offset = 0, fixed_abs, tag = 'sflag constant byte address 0x0 - dummy sync flag']
  #allocation5 [shape = 's32[]', space=sflag, size = 0x4, offset = 0, fixed_abs, tag = 'sflag constant byte address 0x0 - dummy sync flag']
  %s0 = inlined_call_operand.vmem [shape: bf16[2,18,32,128], index: 0, kind: input, shape index: {}]
  %s1 = inlined_call_operand.vmem [shape: bf16[1152,128], index: 1, kind: input, shape index: {}]
  %s2 = inlined_call_operand.vmem [shape: f32[1,128], index: 2, kind: input, shape index: {}]
  %s3 = inlined_call_operand.vmem [shape: bf16[2,256,128], index: 3, kind: output, shape index: {}]
  %s4 = sld [smem:[#allocation0]]
  $region87: #{conv_forward.1} parent=0
    _
  %s6 = ssub.s32 1, %s4
  %s7 = scalar_select 0, %s6, %s4
  loop: start=0, step=1, limit=6
  $region2: #{conv_forward.1} parent=0 // loop_pre_header
    _
  $region3: #{conv_forward.1} parent=0 // loop_header
    %s9 = sphi 0, %s13
    %p10 = scmp.ge.s32.totalorder %s9, 6
    %s16 = sphi 0, %s28
    %s17 = sphi 0, %s24
    %s18 = sphi 0, %s16
    %s19 = sphi 0, %s17
    %s20 = sphi 0, %s18
    %s21 = sphi 0, %s19
    %s29 = sphi 0, %s29
    %s31 = sphi 0, %s29
    %s32 = sphi 0, %s31
    %s46 = sphi 0, %s32
    %s50 = sphi 0, %s50
    %s52 = sphi 0, %s50
    %s53 = sphi 0, %s52
    %s67 = sphi 0, %s53
    %s75 = sphi 0, %s77
    %s78 = sphi 0, %s75
    %s79 = sphi 0, %s78
    %s95 = sphi 0, %s79
  $region4: #{conv_forward.1} parent=0 // loop_header_branch
    %12 = sbr.rel (%p10) target = $region8
  $region5: #{conv_forward.1} parent=0 // loop_body
    %s14 = ssub.s32 %s9, 1
    %s15 = ssub.s32 %s9, 2
    %s22 = sadd.s32 1, %s17
    %p23 = scmp.ge.s32.totalorder %s22, 2
    %s24 = scalar_select %p23, 0, %s22
    %s25 = sadd.s32 1, %s16
    %s26 = scalar_select %p23, %s25, %s16
    %p27 = scmp.ge.s32.totalorder %s26, 2
    %s28 = scalar_select %p27, 0, %s26
    %s30 = sadd.s32 %s29, 1
    %p33 = scmp.eq.s32.totalorder %s9, 3
    %p34 = scmp.ne.s32.totalorder %s29, %s31
    %p35 = scmp.eq.s32.totalorder %s9, 0
    %p36 = por %p34, %p35
    %p37 = scmp.ne.s32.totalorder %s29, %s31
    %p38 = scmp.eq.s32.totalorder %s14, 3
    %p39 = por %p37, %p38
    %p40 = scmp.ne.s32.totalorder %s31, %s32
    %p41 = scmp.eq.s32.totalorder %s14, 0
    %p42 = por %p40, %p41
    %p43 = scmp.ne.s32.totalorder %s31, %s32
    %p44 = scmp.eq.s32.totalorder %s15, 3
    %p45 = por %p43, %p44
    %p47 = scmp.ne.s32.totalorder %s32, %s46
    %p48 = scmp.eq.s32.totalorder %s15, 0
    %p49 = por %p47, %p48
    %s51 = sadd.s32 %s50, 1
    %p54 = scmp.eq.s32.totalorder %s9, 3
    %p55 = scmp.ne.s32.totalorder %s50, %s52
    %p56 = scmp.eq.s32.totalorder %s9, 0
    %p57 = por %p55, %p56
    %p58 = scmp.ne.s32.totalorder %s50, %s52
    %p59 = scmp.eq.s32.totalorder %s14, 3
    %p60 = por %p58, %p59
    %p61 = scmp.ne.s32.totalorder %s52, %s53
    %p62 = scmp.eq.s32.totalorder %s14, 0
    %p63 = por %p61, %p62
    %p64 = scmp.ne.s32.totalorder %s52, %s53
    %p65 = scmp.eq.s32.totalorder %s15, 3
    %p66 = por %p64, %p65
    %p68 = scmp.ne.s32.totalorder %s53, %s67
    %p69 = scmp.eq.s32.totalorder %s15, 0
    %p70 = por %p68, %p69
    %s71 = ssub.s32 %s16, %s28
    %s72 = ssub.s32 %s17, %s24
    %s73 = sor.u32 %s71, %s72
    %p74 = scmp.eq.s32.totalorder %s73, 0
    %s76 = sadd.s32 %s75, 1
    %s77 = scalar_select %p74, %s75, %s76
    %p80 = pneg %p74
    %p81 = scmp.eq.s32.totalorder %s9, 3
    %p82 = por %p80, %p81
    %p83 = scmp.ne.s32.totalorder %s75, %s78
    %p84 = scmp.eq.s32.totalorder %s9, 0
    %p85 = por %p83, %p84
    %p86 = scmp.ne.s32.totalorder %s75, %s78
    %p87 = scmp.eq.s32.totalorder %s14, 3
    %p88 = por %p86, %p87
    %p89 = scmp.ne.s32.totalorder %s78, %s79
    %p90 = scmp.eq.s32.totalorder %s14, 0
    %p91 = por %p89, %p90
    %p92 = scmp.ne.s32.totalorder %s78, %s79
    %p93 = scmp.eq.s32.totalorder %s15, 3
    %p94 = por %p92, %p93
    %p96 = scmp.ne.s32.totalorder %s79, %s95
    %p97 = scmp.eq.s32.totalorder %s15, 0
    %p98 = por %p96, %p97
    %p99 = scmp.le.s32.totalorder 1, %s9
    %p100 = scmp.lt.s32.totalorder %s9, 5
    %p101 = pnand %p99, %p100
    %p102 = pneg %p101
    // Predicated region
    $region9: #{conv_forward.1} parent=5 // pred_check
      _
    $region10: #{conv_forward.1} parent=5 // pred_check_branch
      %104 = sbr.rel (%p101) target = $region12
    $region11: #{conv_forward.1} parent=5 // pred_region
      %s105 = ssub.s32 %s9, 1
      // Predicated region
      $region13: #{conv_forward.1} parent=11 // pred_check
        %p106 = pneg %p42
      $region14: #{conv_forward.1} parent=11 // pred_check_branch
        %108 = sbr.rel (%p106) target = $region16
      $region15: #{conv_forward.1} parent=11 // pred_region
        _
      $region16: #{conv_forward.1} parent=11 // pred_fallthru
        _
      // Predicated region
      $region17: #{conv_forward.1} parent=11 // pred_check
        %p109 = pneg %p63
      $region18: #{conv_forward.1} parent=11 // pred_check_branch
        %111 = sbr.rel (%p109) target = $region20
      $region19: #{conv_forward.1} parent=11 // pred_region
        _
      $region20: #{conv_forward.1} parent=11 // pred_fallthru
        _
    $region12: #{conv_forward.1} parent=5 // pred_fallthru
      _
    %p112 = scmp.lt.s32.totalorder %s9, 4
    // Predicated region
    $region21: #{conv_forward.1} parent=5 // pred_check
      %p113 = pneg %p112
    $region22: #{conv_forward.1} parent=5 // pred_check_branch
      %115 = sbr.rel (%p113) target = $region24
    $region23: #{conv_forward.1} parent=5 // pred_region
      _
    $region24: #{conv_forward.1} parent=5 // pred_fallthru
      _
    %p116 = scmp.le.s32.totalorder 1, %s9
    %p117 = scmp.lt.s32.totalorder %s9, 5
    %p118 = pnand %p116, %p117
    %p119 = pneg %p118
    // Predicated region
    $region25: #{conv_forward.1} parent=5 // pred_check
      _
    $region26: #{conv_forward.1} parent=5 // pred_check_branch
      %121 = sbr.rel (%p118) target = $region28
    $region27: #{conv_forward.1} parent=5 // pred_region
      %s122 = ssub.s32 %s9, 1
      %p123 = pneg %p42
      %p124 = pneg %p39
      %p125 = pneg %p63
      %p126 = pneg %p60
      %p127 = pneg %p91
      %p128 = pneg %p88
      %s129 = smul.u32 16, %s19
      %p130 = scmp.lt.s32.totalorder %s18, 1
      %s131 = scalar_select %p130, %s18, 1
      %p132 = scmp.lt.s32.totalorder %s129, 31
      %s133 = scalar_select %p132, %s129, 31
      %s134 = smul.addr %s131, 32
      %s135 = sadd.s32 %s133, %s134
      %s136 = smul.addr %s135, 4
      %s137 = scalar_lea.vmem %s3, %s136
      %s138 = smul.u32 16, %s19
      %p139 = scmp.lt.s32.totalorder %s18, 1
      %s140 = scalar_select %p139, %s18, 1
      %p141 = scmp.lt.s32.totalorder %s138, 31
      %s142 = scalar_select %p141, %s138, 31
      %s143 = smul.addr %s140, 32
      %s144 = sadd.s32 %s142, %s143
      %s145 = smul.addr %s144, 4
      %s146 = scalar_lea.vmem %s3, %s145
      %s147 = smul.u32 16, %s19
      %p148 = scmp.eq.s32.totalorder %s19, 0
      // Predicated region
      $region29: #{conv_forward.1} parent=27 // pred_check
        %p149 = pneg %p148
      $region30: #{conv_forward.1} parent=27 // pred_check_branch
        %151 = sbr.rel (%p149) target = $region32
      $region31: #{conv_forward.1} parent=27 // pred_region
        %s152 = smul.u32 %s18, 72
        %s153 = smul.addr %s152, 4
        %s154 = scalar_lea.vmem %s0, %s153
        // Predicated region
        $region33: #{conv_forward.1} parent=31 // pred_check
          _
        $region34: #{conv_forward.1} parent=31 // pred_check_branch
          %156 = sbr.rel (0) target = $region36
        $region35: #{conv_forward.1} parent=31 // pred_region
          loop: start=0, step=1, limit=1
          $region37: #{conv_forward.1} parent=35 // loop_pre_header
            _
          $region38: #{conv_forward.1} parent=35 // loop_header
            %s158 = sphi 0, %s162
            %p159 = scmp.ge.s32.totalorder %s158, 1
            %s163 = sphi %s154, %s154
            %s164 = sphi [#allocation2], [#allocation2]
          $region39: #{conv_forward.1} parent=35 // loop_header_branch
            %161 = sbr.rel (%p159) target = $region43
          $region40: #{conv_forward.1} parent=35 // loop_body
            %v165 = vld [vmem:[%s163] sm:$0xff]
            %166 = vst [vmem:[%s164] sm:$0xff] %v165
            %v167 = vld [vmem:[%s163 + $0x8] sm:$0xff]
            %168 = vst [vmem:[%s164 + $0x8] sm:$0xff] %v167
            %v169 = vld [vmem:[%s163 + $0x10] sm:$0xff]
            %170 = vst [vmem:[%s164 + $0x10] sm:$0xff] %v169
            %v171 = vld [vmem:[%s163 + $0x18] sm:$0xff]
            %172 = vst [vmem:[%s164 + $0x18] sm:$0xff] %v171
            %v173 = vld [vmem:[%s163 + $0x20] sm:$0xff]
            %174 = vst [vmem:[%s164 + $0x20] sm:$0xff] %v173
            %v175 = vld [vmem:[%s163 + $0x28] sm:$0xff]
            %176 = vst [vmem:[%s164 + $0x28] sm:$0xff] %v175
            %v177 = vld [vmem:[%s163 + $0x30] sm:$0xff]
            %178 = vst [vmem:[%s164 + $0x30] sm:$0xff] %v177
            %v179 = vld [vmem:[%s163 + $0x38] sm:$0xff]
            %180 = vst [vmem:[%s164 + $0x38] sm:$0xff] %v179
            %v181 = vld [vmem:[%s163 + $0x40] sm:$0xff]
            %182 = vst [vmem:[%s164 + $0x40] sm:$0xff] %v181
            %v183 = vld [vmem:[%s163 + $0x48] sm:$0xff]
            %184 = vst [vmem:[%s164 + $0x48] sm:$0xff] %v183
            %v185 = vld [vmem:[%s163 + $0x50] sm:$0xff]
            %186 = vst [vmem:[%s164 + $0x50] sm:$0xff] %v185
            %v187 = vld [vmem:[%s163 + $0x58] sm:$0xff]
            %188 = vst [vmem:[%s164 + $0x58] sm:$0xff] %v187
            %v189 = vld [vmem:[%s163 + $0x60] sm:$0xff]
            %190 = vst [vmem:[%s164 + $0x60] sm:$0xff] %v189
            %v191 = vld [vmem:[%s163 + $0x68] sm:$0xff]
            %192 = vst [vmem:[%s164 + $0x68] sm:$0xff] %v191
            %v193 = vld [vmem:[%s163 + $0x70] sm:$0xff]
            %194 = vst [vmem:[%s164 + $0x70] sm:$0xff] %v193
            %v195 = vld [vmem:[%s163 + $0x78] sm:$0xff]
            %196 = vst [vmem:[%s164 + $0x78] sm:$0xff] %v195
            %v197 = vld [vmem:[%s163 + $0x80] sm:$0xff]
            %198 = vst [vmem:[%s164 + $0x80] sm:$0xff] %v197
            %v199 = vld [vmem:[%s163 + $0x88] sm:$0xff]
            %200 = vst [vmem:[%s164 + $0x88] sm:$0xff] %v199
            %v201 = vld [vmem:[%s163 + $0x90] sm:$0xff]
            %202 = vst [vmem:[%s164 + $0x90] sm:$0xff] %v201
            %v203 = vld [vmem:[%s163 + $0x98] sm:$0xff]
            %204 = vst [vmem:[%s164 + $0x98] sm:$0xff] %v203
          $region41: #{conv_forward.1} parent=35 // loop_footer
            %s162 = sadd.s32 1, %s158
          $region42: #{conv_forward.1} parent=35 // loop_footer_branch
            %157 = sbr.rel target = $region38
          $region43: #{conv_forward.1} parent=35 // loop_exit
            _
        $region36: #{conv_forward.1} parent=31 // pred_fallthru
          _
        // Predicated region
        $region44: #{conv_forward.1} parent=31 // pred_check
          _
        $region45: #{conv_forward.1} parent=31 // pred_check_branch
          %206 = sbr.rel target = $region47
        $region46: #{conv_forward.1} parent=31 // pred_region
          _
        $region47: #{conv_forward.1} parent=31 // pred_fallthru
          _
        // Predicated region
        $region48: #{conv_forward.1} parent=31 // pred_check
          _
        $region49: #{conv_forward.1} parent=31 // pred_check_branch
          %209 = sbr.rel (0) target = $region51
        $region50: #{conv_forward.1} parent=31 // pred_region
          %210 = vsyncadd [#allocation3], 2560
        $region51: #{conv_forward.1} parent=31 // pred_fallthru
          _
      $region32: #{conv_forward.1} parent=27 // pred_fallthru
        _
      %s211 = sadd.s32 %s19, 1
      %p212 = scmp.lt.s32.totalorder %s211, 2
      // Predicated region
      $region52: #{conv_forward.1} parent=27 // pred_check
        %p213 = pneg %p212
      $region53: #{conv_forward.1} parent=27 // pred_check_branch
        %215 = sbr.rel (%p213) target = $region55
      $region54: #{conv_forward.1} parent=27 // pred_region
        %p216 = scmp.lt.s32.totalorder %s211, 0
        %s217 = ssub.s32 0, %s211
        %s218 = scalar_select %p216, %s217, %s211
        %s219 = sand.u32 %s218, 1
        %s220 = ssub.s32 0, %s219
        %s221 = scalar_select %p216, %s220, %s219
        %p222 = scmp.ne.s32.totalorder %s221, 0
        %p223 = scmp.lt.s32.totalorder %s221, 0
        %p224 = pnand %p223, %p222
        %p225 = pneg %p224
        %s226 = sadd.s32 %s221, 2
        %s227 = scalar_select %p225, %s226, %s221
        %s228 = smul.u32 %s211, 8
        %s229 = smul.u32 %s228, 4
        %s230 = smul.u32 %s18, 72
        %s231 = sadd.s32 %s229, %s230
        %s232 = smul.addr %s231, 4
        %s233 = scalar_lea.vmem %s0, %s232
        %s234 = smul.u32 %s227, 40
        %s235 = smul.addr %s234, 4
        %s236 = scalar_lea.vmem [#allocation2], %s235
        %s237 = scalar_lea.sflag [#allocation3], %s227
        // Predicated region
        $region56: #{conv_forward.1} parent=54 // pred_check
          _
        $region57: #{conv_forward.1} parent=54 // pred_check_branch
          %239 = sbr.rel (0) target = $region59
        $region58: #{conv_forward.1} parent=54 // pred_region
          loop: start=0, step=1, limit=1
          $region60: #{conv_forward.1} parent=58 // loop_pre_header
            _
          $region61: #{conv_forward.1} parent=58 // loop_header
            %s241 = sphi 0, %s245
            %p242 = scmp.ge.s32.totalorder %s241, 1
            %s246 = sphi %s233, %s233
            %s247 = sphi %s236, %s236
          $region62: #{conv_forward.1} parent=58 // loop_header_branch
            %244 = sbr.rel (%p242) target = $region66
          $region63: #{conv_forward.1} parent=58 // loop_body
            %v248 = vld [vmem:[%s246] sm:$0xff]
            %249 = vst [vmem:[%s247] sm:$0xff] %v248
            %v250 = vld [vmem:[%s246 + $0x8] sm:$0xff]
            %251 = vst [vmem:[%s247 + $0x8] sm:$0xff] %v250
            %v252 = vld [vmem:[%s246 + $0x10] sm:$0xff]
            %253 = vst [vmem:[%s247 + $0x10] sm:$0xff] %v252
            %v254 = vld [vmem:[%s246 + $0x18] sm:$0xff]
            %255 = vst [vmem:[%s247 + $0x18] sm:$0xff] %v254
            %v256 = vld [vmem:[%s246 + $0x20] sm:$0xff]
            %257 = vst [vmem:[%s247 + $0x20] sm:$0xff] %v256
            %v258 = vld [vmem:[%s246 + $0x28] sm:$0xff]
            %259 = vst [vmem:[%s247 + $0x28] sm:$0xff] %v258
            %v260 = vld [vmem:[%s246 + $0x30] sm:$0xff]
            %261 = vst [vmem:[%s247 + $0x30] sm:$0xff] %v260
            %v262 = vld [vmem:[%s246 + $0x38] sm:$0xff]
            %263 = vst [vmem:[%s247 + $0x38] sm:$0xff] %v262
            %v264 = vld [vmem:[%s246 + $0x40] sm:$0xff]
            %265 = vst [vmem:[%s247 + $0x40] sm:$0xff] %v264
            %v266 = vld [vmem:[%s246 + $0x48] sm:$0xff]
            %267 = vst [vmem:[%s247 + $0x48] sm:$0xff] %v266
            %v268 = vld [vmem:[%s246 + $0x50] sm:$0xff]
            %269 = vst [vmem:[%s247 + $0x50] sm:$0xff] %v268
            %v270 = vld [vmem:[%s246 + $0x58] sm:$0xff]
            %271 = vst [vmem:[%s247 + $0x58] sm:$0xff] %v270
            %v272 = vld [vmem:[%s246 + $0x60] sm:$0xff]
            %273 = vst [vmem:[%s247 + $0x60] sm:$0xff] %v272
            %v274 = vld [vmem:[%s246 + $0x68] sm:$0xff]
            %275 = vst [vmem:[%s247 + $0x68] sm:$0xff] %v274
            %v276 = vld [vmem:[%s246 + $0x70] sm:$0xff]
            %277 = vst [vmem:[%s247 + $0x70] sm:$0xff] %v276
            %v278 = vld [vmem:[%s246 + $0x78] sm:$0xff]
            %279 = vst [vmem:[%s247 + $0x78] sm:$0xff] %v278
            %v280 = vld [vmem:[%s246 + $0x80] sm:$0xff]
            %281 = vst [vmem:[%s247 + $0x80] sm:$0xff] %v280
            %v282 = vld [vmem:[%s246 + $0x88] sm:$0xff]
            %283 = vst [vmem:[%s247 + $0x88] sm:$0xff] %v282
            %v284 = vld [vmem:[%s246 + $0x90] sm:$0xff]
            %285 = vst [vmem:[%s247 + $0x90] sm:$0xff] %v284
            %v286 = vld [vmem:[%s246 + $0x98] sm:$0xff]
            %287 = vst [vmem:[%s247 + $0x98] sm:$0xff] %v286
          $region64: #{conv_forward.1} parent=58 // loop_footer
            %s245 = sadd.s32 1, %s241
          $region65: #{conv_forward.1} parent=58 // loop_footer_branch
            %240 = sbr.rel target = $region61
          $region66: #{conv_forward.1} parent=58 // loop_exit
            _
        $region59: #{conv_forward.1} parent=54 // pred_fallthru
          _
        // Predicated region
        $region67: #{conv_forward.1} parent=54 // pred_check
          _
        $region68: #{conv_forward.1} parent=54 // pred_check_branch
          %289 = sbr.rel target = $region70
        $region69: #{conv_forward.1} parent=54 // pred_region
          _
        $region70: #{conv_forward.1} parent=54 // pred_fallthru
          _
        // Predicated region
        $region71: #{conv_forward.1} parent=54 // pred_check
          _
        $region72: #{conv_forward.1} parent=54 // pred_check_branch
          %292 = sbr.rel (0) target = $region74
        $region73: #{conv_forward.1} parent=54 // pred_region
          %293 = vsyncadd %s237, 2560
        $region74: #{conv_forward.1} parent=54 // pred_fallthru
          _
      $region55: #{conv_forward.1} parent=27 // pred_fallthru
        _
      %p294 = scmp.lt.s32.totalorder %s19, 0
      %s295 = ssub.s32 0, %s19
      %s296 = scalar_select %p294, %s295, %s19
      %s297 = sand.u32 %s296, 1
      %s298 = ssub.s32 0, %s297
      %s299 = scalar_select %p294, %s298, %s297
      %p300 = scmp.ne.s32.totalorder %s299, 0
      %p301 = scmp.lt.s32.totalorder %s299, 0
      %p302 = pnand %p301, %p300
      %p303 = pneg %p302
      %s304 = sadd.s32 %s299, 2
      %s305 = scalar_select %p303, %s304, %s299
      %s306 = smul.u32 %s305, 40
      %s307 = smul.addr %s306, 4
      %s308 = scalar_lea.vmem [#allocation2], %s307
      %s309 = scalar_lea.sflag [#allocation3], %s305
      %s310 = smul.u32 4, 10
      %s311 = smul.u32 %s310, 4
      %s312 = smul.u32 %s311, 1
      %s313 = sshll.u32 %s312, 4
      %314 = dma.done %s309, %s313
      %v315 = vld [vmem:[%s308] sm:$0xf]
      %v316 = vld [vmem:[%s308 + $0x4] sm:$0xf]
      %v317 = vld [vmem:[%s308 + $0x8] sm:$0xf]
      %v318 = vld [vmem:[%s308 + $0x10] sm:$0xf]
      %v319 = vld [vmem:[%s308 + $0x14] sm:$0xf]
      %v320 = vld [vmem:[%s308 + $0x18] sm:$0xf]
      %v321 = vld [vmem:[%s308 + $0x20] sm:$0xf]
      %v322 = vld [vmem:[%s308 + $0x24] sm:$0xf]
      %v323 = vld [vmem:[%s308 + $0x28] sm:$0xf]
      %v324 = vld [vmem:[%s308 + $0x30] sm:$0xf]
      %v325 = vld [vmem:[%s308 + $0x34] sm:$0xf]
      %v326 = vld [vmem:[%s308 + $0x38] sm:$0xf]
      %v327 = vld [vmem:[%s308 + $0x40] sm:$0xf]
      %v328 = vld [vmem:[%s308 + $0x44] sm:$0xf]
      %v329 = vld [vmem:[%s308 + $0x48] sm:$0xf]
      %v330 = vld [vmem:[%s308 + $0x50] sm:$0xf]
      %v331 = vld [vmem:[%s308 + $0x54] sm:$0xf]
      %v332 = vld [vmem:[%s308 + $0x58] sm:$0xf]
      %v333 = vld [vmem:[%s308 + $0x60] sm:$0xf]
      %v334 = vld [vmem:[%s308 + $0x64] sm:$0xf]
      %v335 = vld [vmem:[%s308 + $0x68] sm:$0xf]
      %v336 = vld [vmem:[%s308 + $0x70] sm:$0xf]
      %v337 = vld [vmem:[%s308 + $0x74] sm:$0xf]
      %v338 = vld [vmem:[%s308 + $0x78] sm:$0xf]
      %v339 = vld [vmem:[%s308 + $0x80] sm:$0xf]
      %v340 = vld [vmem:[%s308 + $0x84] sm:$0xf]
      %v341 = vld [vmem:[%s308 + $0x88] sm:$0xf]
      %v342 = vld [vmem:[%s308 + $0x90] sm:$0xf]
      %v343 = vld [vmem:[%s308 + $0x94] sm:$0xf]
      %v344 = vld [vmem:[%s308 + $0x98] sm:$0xf]
      %v345 = vld [vmem:[%s1] sm:$0xf]
      %v346 = vld [vmem:[%s1 + $0x4] sm:$0xf]
      %v347 = vld [vmem:[%s1 + $0x8] sm:$0xf]
      %v348 = vld [vmem:[%s1 + $0xc] sm:$0xf]
      %v349 = vld [vmem:[%s1 + $0x10] sm:$0xf]
      %v350 = vld [vmem:[%s1 + $0x14] sm:$0xf]
      %v351 = vld [vmem:[%s1 + $0x18] sm:$0xf]
      %v352 = vld [vmem:[%s1 + $0x1c] sm:$0xf]
      %v353 = vld [vmem:[%s1 + $0x20] sm:$0xf]
      %v354 = vld [vmem:[%s1 + $0x24] sm:$0xf]
      %v355 = vld [vmem:[%s1 + $0x28] sm:$0xf]
      %v356 = vld [vmem:[%s1 + $0x2c] sm:$0xf]
      %v357 = vld [vmem:[%s1 + $0x30] sm:$0xf]
      %v358 = vld [vmem:[%s1 + $0x34] sm:$0xf]
      %v359 = vld [vmem:[%s1 + $0x38] sm:$0xf]
      %v360 = vld [vmem:[%s1 + $0x3c] sm:$0xf]
      %v361 = vld [vmem:[%s1 + $0xc0] sm:$0xf]
      %v362 = vld [vmem:[%s1 + $0xc4] sm:$0xf]
      %v363 = vld [vmem:[%s1 + $0xc8] sm:$0xf]
      %v364 = vld [vmem:[%s1 + $0xcc] sm:$0xf]
      %v365 = vld [vmem:[%s1 + $0xd0] sm:$0xf]
      %v366 = vld [vmem:[%s1 + $0xd4] sm:$0xf]
      %v367 = vld [vmem:[%s1 + $0xd8] sm:$0xf]
      %v368 = vld [vmem:[%s1 + $0xdc] sm:$0xf]
      %v369 = vld [vmem:[%s1 + $0xe0] sm:$0xf]
      %v370 = vld [vmem:[%s1 + $0xe4] sm:$0xf]
      %v371 = vld [vmem:[%s1 + $0xe8] sm:$0xf]
      %v372 = vld [vmem:[%s1 + $0xec] sm:$0xf]
      %v373 = vld [vmem:[%s1 + $0xf0] sm:$0xf]
      %v374 = vld [vmem:[%s1 + $0xf4] sm:$0xf]
      %v375 = vld [vmem:[%s1 + $0xf8] sm:$0xf]
      %v376 = vld [vmem:[%s1 + $0xfc] sm:$0xf]
      %v393 = vunpack.c.l.b16 %v318
      %v394 = vunpack.c.l.b16 %v319
      %v395 = vunpack.c.l.b16 %v321
      %v396 = vunpack.c.l.b16 %v322
      %v397 = vunpack.c.l.b16 %v324
      %v398 = vunpack.c.l.b16 %v325
      %v399 = vunpack.c.l.b16 %v327
      %v400 = vunpack.c.l.b16 %v328
      %v401 = vunpack.c.l.b16 %v330
      %v402 = vunpack.c.l.b16 %v331
      %v403 = vunpack.c.l.b16 %v333
      %v404 = vunpack.c.l.b16 %v334
      %v405 = vunpack.c.l.b16 %v336
      %v406 = vunpack.c.l.b16 %v337
      %v407 = vunpack.c.l.b16 %v339
      %v408 = vunpack.c.l.b16 %v340
      %v409 = vpack.c.b16 %v394, %v393
      %v410 = vpack.c.b16 %v396, %v395
      %v411 = vpack.c.b16 %v398, %v397
      %v412 = vpack.c.b16 %v400, %v399
      %v413 = vpack.c.b16 %v402, %v401
      %v414 = vpack.c.b16 %v404, %v403
      %v415 = vpack.c.b16 %v406, %v405
      %v416 = vpack.c.b16 %v408, %v407
      %v441 = vunpack.c.l.b16 %v361
      %v442 = vunpack.c.l.b16 %v362
      %v443 = vunpack.c.l.b16 %v363
      %v444 = vunpack.c.l.b16 %v364
      %v445 = vunpack.c.l.b16 %v365
      %v446 = vunpack.c.l.b16 %v366
      %v447 = vunpack.c.l.b16 %v367
      %v448 = vunpack.c.l.b16 %v368
      %v449 = vunpack.c.l.b16 %v369
      %v450 = vunpack.c.l.b16 %v370
      %v451 = vunpack.c.l.b16 %v371
      %v452 = vunpack.c.l.b16 %v372
      %v453 = vunpack.c.l.b16 %v373
      %v454 = vunpack.c.l.b16 %v374
      %v455 = vunpack.c.l.b16 %v375
      %v456 = vunpack.c.l.b16 %v376
      %v457 = vpack.c.b16 %v442, %v441
      %v458 = vpack.c.b16 %v444, %v443
      %v459 = vpack.c.b16 %v446, %v445
      %v460 = vpack.c.b16 %v448, %v447
      %v461 = vpack.c.b16 %v450, %v449
      %v462 = vpack.c.b16 %v452, %v451
      %v463 = vpack.c.b16 %v454, %v453
      %v464 = vpack.c.b16 %v456, %v455
      %473 = vmatpush.bf16.msra.mxu0 %v464
      %474 = vmatpush.bf16.msra.mxu0 %v463
      %475 = vmatpush.bf16.msra.mxu0 %v462
      %476 = vmatpush.bf16.msra.mxu0 %v461
      %477 = vmatpush.bf16.msra.mxu0 %v460
      %478 = vmatpush.bf16.msra.mxu0 %v459
      %479 = vmatpush.bf16.msra.mxu0 %v458
      %480 = vmatpush.bf16.msra.mxu0 %v457
      %481 = vmatmul.bf16.gmra.mxu0 %v409
      %v482 = vpop.f32.mrf.mxu0
      %v483 = vadd.f32 0.0, %v482
      %v484 = vpop.f32.mrf.mxu0
      %v485 = vadd.f32 0.0, %v484
      %486 = vmatmul.bf16.gmra.mxu0 %v410
      %v487 = vpop.f32.mrf.mxu0
      %v488 = vadd.f32 0.0, %v487
      %v489 = vpop.f32.mrf.mxu0
      %v490 = vadd.f32 0.0, %v489
      %491 = vmatmul.bf16.gmra.mxu0 %v411
      %v492 = vpop.f32.mrf.mxu0
      %v493 = vadd.f32 0.0, %v492
      %v494 = vpop.f32.mrf.mxu0
      %v495 = vadd.f32 0.0, %v494
      %496 = vmatmul.bf16.gmra.mxu0 %v412
      %v497 = vpop.f32.mrf.mxu0
      %v498 = vadd.f32 0.0, %v497
      %v499 = vpop.f32.mrf.mxu0
      %v500 = vadd.f32 0.0, %v499
      %501 = vmatmul.bf16.gmra.mxu0 %v413
      %v502 = vpop.f32.mrf.mxu0
      %v503 = vadd.f32 0.0, %v502
      %v504 = vpop.f32.mrf.mxu0
      %v505 = vadd.f32 0.0, %v504
      %506 = vmatmul.bf16.gmra.mxu0 %v414
      %v507 = vpop.f32.mrf.mxu0
      %v508 = vadd.f32 0.0, %v507
      %v509 = vpop.f32.mrf.mxu0
      %v510 = vadd.f32 0.0, %v509
      %511 = vmatmul.bf16.gmra.mxu0 %v415
      %v512 = vpop.f32.mrf.mxu0
      %v513 = vadd.f32 0.0, %v512
      %v514 = vpop.f32.mrf.mxu0
      %v515 = vadd.f32 0.0, %v514
      %516 = vmatmul.bf16.gmra.mxu0 %v416
      %v517 = vpop.f32.mrf.mxu0
      %v518 = vadd.f32 0.0, %v517
      %v519 = vpop.f32.mrf.mxu0
      %v520 = vadd.f32 0.0, %v519
      %521 = vdwg.mxu0
      %v524 = vunpack.c.l.b16 %v315
      %v525 = vunpack.c.l.b16 %v316
      %v526 = vpack.c.b16 %v525, %v524
      %v544 = vunpack.c.l.b16 %v345
      %v545 = vunpack.c.l.b16 %v346
      %v546 = vunpack.c.l.b16 %v347
      %v547 = vunpack.c.l.b16 %v348
      %v548 = vunpack.c.l.b16 %v349
      %v549 = vunpack.c.l.b16 %v350
      %v550 = vunpack.c.l.b16 %v351
      %v551 = vunpack.c.l.b16 %v352
      %v552 = vunpack.c.l.b16 %v353
      %v553 = vunpack.c.l.b16 %v354
      %v554 = vunpack.c.l.b16 %v355
      %v555 = vunpack.c.l.b16 %v356
      %v556 = vunpack.c.l.b16 %v357
      %v557 = vunpack.c.l.b16 %v358
      %v558 = vunpack.c.l.b16 %v359
      %v559 = vunpack.c.l.b16 %v360
      %v560 = vpack.c.b16 %v545, %v544
      %v561 = vpack.c.b16 %v547, %v546
      %v562 = vpack.c.b16 %v549, %v548
      %v563 = vpack.c.b16 %v551, %v550
      %v564 = vpack.c.b16 %v553, %v552
      %v565 = vpack.c.b16 %v555, %v554
      %v566 = vpack.c.b16 %v557, %v556
      %v567 = vpack.c.b16 %v559, %v558
      %576 = vmatpush.bf16.msra.mxu0 %v567
      %577 = vmatpush.bf16.msra.mxu0 %v566
      %578 = vmatpush.bf16.msra.mxu0 %v565
      %579 = vmatpush.bf16.msra.mxu0 %v564
      %580 = vmatpush.bf16.msra.mxu0 %v563
      %581 = vmatpush.bf16.msra.mxu0 %v562
      %582 = vmatpush.bf16.msra.mxu0 %v561
      %583 = vmatpush.bf16.msra.mxu0 %v560
      %584 = vmatmul.bf16.gmra.mxu0 %v526
      %v585 = vpop.f32.mrf.mxu0
      %v586 = vadd.f32 %v483, %v585
      %v587 = vpop.f32.mrf.mxu0
      %v588 = vadd.f32 %v485, %v587
      %589 = vmatmul.bf16.gmra.mxu0 %v409
      %v590 = vpop.f32.mrf.mxu0
      %v591 = vadd.f32 %v488, %v590
      %v592 = vpop.f32.mrf.mxu0
      %v593 = vadd.f32 %v490, %v592
      %594 = vmatmul.bf16.gmra.mxu0 %v410
      %v595 = vpop.f32.mrf.mxu0
      %v596 = vadd.f32 %v493, %v595
      %v597 = vpop.f32.mrf.mxu0
      %v598 = vadd.f32 %v495, %v597
      %599 = vmatmul.bf16.gmra.mxu0 %v411
      %v600 = vpop.f32.mrf.mxu0
      %v601 = vadd.f32 %v498, %v600
      %v602 = vpop.f32.mrf.mxu0
      %v603 = vadd.f32 %v500, %v602
      %604 = vmatmul.bf16.gmra.mxu0 %v412
      %v605 = vpop.f32.mrf.mxu0
      %v606 = vadd.f32 %v503, %v605
      %v607 = vpop.f32.mrf.mxu0
      %v608 = vadd.f32 %v505, %v607
      %609 = vmatmul.bf16.gmra.mxu0 %v413
      %v610 = vpop.f32.mrf.mxu0
      %v611 = vadd.f32 %v508, %v610
      %v612 = vpop.f32.mrf.mxu0
      %v613 = vadd.f32 %v510, %v612
      %614 = vmatmul.bf16.gmra.mxu0 %v414
      %v615 = vpop.f32.mrf.mxu0
      %v616 = vadd.f32 %v513, %v615
      %v617 = vpop.f32.mrf.mxu0
      %v618 = vadd.f32 %v515, %v617
      %619 = vmatmul.bf16.gmra.mxu0 %v415
      %v620 = vpop.f32.mrf.mxu0
      %v621 = vadd.f32 %v518, %v620
      %v622 = vpop.f32.mrf.mxu0
      %v623 = vadd.f32 %v520, %v622
      %624 = vdwg.mxu0
      %v625 = vld [vmem:[%s1 + $0x180] sm:$0xf]
      %v626 = vld [vmem:[%s1 + $0x184] sm:$0xf]
      %v627 = vld [vmem:[%s1 + $0x188] sm:$0xf]
      %v628 = vld [vmem:[%s1 + $0x18c] sm:$0xf]
      %v629 = vld [vmem:[%s1 + $0x190] sm:$0xf]
      %v630 = vld [vmem:[%s1 + $0x194] sm:$0xf]
      %v631 = vld [vmem:[%s1 + $0x198] sm:$0xf]
      %v632 = vld [vmem:[%s1 + $0x19c] sm:$0xf]
      %v633 = vld [vmem:[%s1 + $0x1a0] sm:$0xf]
      %v634 = vld [vmem:[%s1 + $0x1a4] sm:$0xf]
      %v635 = vld [vmem:[%s1 + $0x1a8] sm:$0xf]
      %v636 = vld [vmem:[%s1 + $0x1ac] sm:$0xf]
      %v637 = vld [vmem:[%s1 + $0x1b0] sm:$0xf]
      %v638 = vld [vmem:[%s1 + $0x1b4] sm:$0xf]
      %v639 = vld [vmem:[%s1 + $0x1b8] sm:$0xf]
      %v640 = vld [vmem:[%s1 + $0x1bc] sm:$0xf]
      %v643 = vunpack.c.l.b16 %v342
      %v644 = vunpack.c.l.b16 %v343
      %v645 = vpack.c.b16 %v644, %v643
      %v663 = vunpack.c.l.b16 %v625
      %v664 = vunpack.c.l.b16 %v626
      %v665 = vunpack.c.l.b16 %v627
      %v666 = vunpack.c.l.b16 %v628
      %v667 = vunpack.c.l.b16 %v629
      %v668 = vunpack.c.l.b16 %v630
      %v669 = vunpack.c.l.b16 %v631
      %v670 = vunpack.c.l.b16 %v632
      %v671 = vunpack.c.l.b16 %v633
      %v672 = vunpack.c.l.b16 %v634
      %v673 = vunpack.c.l.b16 %v635
      %v674 = vunpack.c.l.b16 %v636
      %v675 = vunpack.c.l.b16 %v637
      %v676 = vunpack.c.l.b16 %v638
      %v677 = vunpack.c.l.b16 %v639
      %v678 = vunpack.c.l.b16 %v640
      %v679 = vpack.c.b16 %v664, %v663
      %v680 = vpack.c.b16 %v666, %v665
      %v681 = vpack.c.b16 %v668, %v667
      %v682 = vpack.c.b16 %v670, %v669
      %v683 = vpack.c.b16 %v672, %v671
      %v684 = vpack.c.b16 %v674, %v673
      %v685 = vpack.c.b16 %v676, %v675
      %v686 = vpack.c.b16 %v678, %v677
      %695 = vmatpush.bf16.msra.mxu0 %v686
      %696 = vmatpush.bf16.msra.mxu0 %v685
      %697 = vmatpush.bf16.msra.mxu0 %v684
      %698 = vmatpush.bf16.msra.mxu0 %v683
      %699 = vmatpush.bf16.msra.mxu0 %v682
      %700 = vmatpush.bf16.msra.mxu0 %v681
      %701 = vmatpush.bf16.msra.mxu0 %v680
      %702 = vmatpush.bf16.msra.mxu0 %v679
      %703 = vmatmul.bf16.gmra.mxu0 %v410
      %v704 = vpop.f32.mrf.mxu0
      %v705 = vadd.f32 0.0, %v704
      %v706 = vpop.f32.mrf.mxu0
      %v707 = vadd.f32 0.0, %v706
      %708 = vmatmul.bf16.gmra.mxu0 %v411
      %v709 = vpop.f32.mrf.mxu0
      %v710 = vadd.f32 0.0, %v709
      %v711 = vpop.f32.mrf.mxu0
      %v712 = vadd.f32 0.0, %v711
      %713 = vmatmul.bf16.gmra.mxu0 %v412
      %v714 = vpop.f32.mrf.mxu0
      %v715 = vadd.f32 0.0, %v714
      %v716 = vpop.f32.mrf.mxu0
      %v717 = vadd.f32 0.0, %v716
      %718 = vmatmul.bf16.gmra.mxu0 %v413
      %v719 = vpop.f32.mrf.mxu0
      %v720 = vadd.f32 0.0, %v719
      %v721 = vpop.f32.mrf.mxu0
      %v722 = vadd.f32 0.0, %v721
      %723 = vmatmul.bf16.gmra.mxu0 %v414
      %v724 = vpop.f32.mrf.mxu0
      %v725 = vadd.f32 0.0, %v724
      %v726 = vpop.f32.mrf.mxu0
      %v727 = vadd.f32 0.0, %v726
      %728 = vmatmul.bf16.gmra.mxu0 %v415
      %v729 = vpop.f32.mrf.mxu0
      %v730 = vadd.f32 0.0, %v729
      %v731 = vpop.f32.mrf.mxu0
      %v732 = vadd.f32 0.0, %v731
      %733 = vmatmul.bf16.gmra.mxu0 %v416
      %v734 = vpop.f32.mrf.mxu0
      %v735 = vadd.f32 0.0, %v734
      %v736 = vpop.f32.mrf.mxu0
      %v737 = vadd.f32 0.0, %v736
      %738 = vmatmul.bf16.gmra.mxu0 %v645
      %v739 = vpop.f32.mrf.mxu0
      %v740 = vadd.f32 0.0, %v739
      %v741 = vpop.f32.mrf.mxu0
      %v742 = vadd.f32 0.0, %v741
      %743 = vdwg.mxu0
      %v744 = vadd.f32 %v586, %v705
      %v745 = vadd.f32 %v588, %v707
      %v746 = vadd.f32 %v591, %v710
      %v747 = vadd.f32 %v593, %v712
      %v748 = vadd.f32 %v596, %v715
      %v749 = vadd.f32 %v598, %v717
      %v750 = vadd.f32 %v601, %v720
      %v751 = vadd.f32 %v603, %v722
      %v752 = vadd.f32 %v606, %v725
      %v753 = vadd.f32 %v608, %v727
      %v754 = vadd.f32 %v611, %v730
      %v755 = vadd.f32 %v613, %v732
      %v756 = vadd.f32 %v616, %v735
      %v757 = vadd.f32 %v618, %v737
      %v758 = vadd.f32 %v621, %v740
      %v759 = vadd.f32 %v623, %v742
      %vm760 = vsmask.f32 3328
      %vm761 = vsmask.f32 7440
      %vm762 = vmor %vm760, %vm761
      %v764 = vshrl.u32 %v315, 16
      %v766 = vrot.slane %v764, 4
      %v767 = vshll.u32 %v315, 16
      %v769 = vrot.slane %v767, 5
      %v770 = vor.u32 %v766, %v769
      %v771 = vrot.slane %v770, 4
      %v773 = vshll.u32 %v316, 16
      %v775 = vrot.slane %v773, 5
      %v776 = vsel %vm762, %v771, %v775
      %v777 = vshrl.u32 %v316, 16
      %v779 = vrot.slane %v777, 4
      %v780 = vor.u32 %v779, %v775
      %v781 = vrot.slane %v780, 4
      %v783 = vshll.u32 %v317, 16
      %v785 = vrot.slane %v783, 5
      %v786 = vsel %vm762, %v781, %v785
      %v788 = vshrl.u32 %v318, 16
      %v790 = vrot.slane %v788, 4
      %v791 = vshll.u32 %v318, 16
      %v793 = vrot.slane %v791, 5
      %v794 = vor.u32 %v790, %v793
      %v795 = vrot.slane %v794, 4
      %v797 = vshll.u32 %v319, 16
      %v799 = vrot.slane %v797, 5
      %v800 = vsel %vm762, %v795, %v799
      %v801 = vshrl.u32 %v319, 16
      %v803 = vrot.slane %v801, 4
      %v804 = vor.u32 %v803, %v799
      %v805 = vrot.slane %v804, 4
      %v807 = vshll.u32 %v320, 16
      %v809 = vrot.slane %v807, 5
      %v810 = vsel %vm762, %v805, %v809
      %v812 = vshrl.u32 %v321, 16
      %v814 = vrot.slane %v812, 4
      %v815 = vshll.u32 %v321, 16
      %v817 = vrot.slane %v815, 5
      %v818 = vor.u32 %v814, %v817
      %v819 = vrot.slane %v818, 4
      %v821 = vshll.u32 %v322, 16
      %v823 = vrot.slane %v821, 5
      %v824 = vsel %vm762, %v819, %v823
      %v825 = vshrl.u32 %v322, 16
      %v827 = vrot.slane %v825, 4
      %v828 = vor.u32 %v827, %v823
      %v829 = vrot.slane %v828, 4
      %v831 = vshll.u32 %v323, 16
      %v833 = vrot.slane %v831, 5
      %v834 = vsel %vm762, %v829, %v833
      %v836 = vshrl.u32 %v324, 16
      %v838 = vrot.slane %v836, 4
      %v839 = vshll.u32 %v324, 16
      %v841 = vrot.slane %v839, 5
      %v842 = vor.u32 %v838, %v841
      %v843 = vrot.slane %v842, 4
      %v845 = vshll.u32 %v325, 16
      %v847 = vrot.slane %v845, 5
      %v848 = vsel %vm762, %v843, %v847
      %v849 = vshrl.u32 %v325, 16
      %v851 = vrot.slane %v849, 4
      %v852 = vor.u32 %v851, %v847
      %v853 = vrot.slane %v852, 4
      %v855 = vshll.u32 %v326, 16
      %v857 = vrot.slane %v855, 5
      %v858 = vsel %vm762, %v853, %v857
      %v860 = vshrl.u32 %v327, 16
      %v862 = vrot.slane %v860, 4
      %v863 = vshll.u32 %v327, 16
      %v865 = vrot.slane %v863, 5
      %v866 = vor.u32 %v862, %v865
      %v867 = vrot.slane %v866, 4
      %v869 = vshll.u32 %v328, 16
      %v871 = vrot.slane %v869, 5
      %v872 = vsel %vm762, %v867, %v871
      %v873 = vshrl.u32 %v328, 16
      %v875 = vrot.slane %v873, 4
      %v876 = vor.u32 %v875, %v871
      %v877 = vrot.slane %v876, 4
      %v879 = vshll.u32 %v329, 16
      %v881 = vrot.slane %v879, 5
      %v882 = vsel %vm762, %v877, %v881
      %v884 = vshrl.u32 %v330, 16
      %v886 = vrot.slane %v884, 4
      %v887 = vshll.u32 %v330, 16
      %v889 = vrot.slane %v887, 5
      %v890 = vor.u32 %v886, %v889
      %v891 = vrot.slane %v890, 4
      %v893 = vshll.u32 %v331, 16
      %v895 = vrot.slane %v893, 5
      %v896 = vsel %vm762, %v891, %v895
      %v897 = vshrl.u32 %v331, 16
      %v899 = vrot.slane %v897, 4
      %v900 = vor.u32 %v899, %v895
      %v901 = vrot.slane %v900, 4
      %v903 = vshll.u32 %v332, 16
      %v905 = vrot.slane %v903, 5
      %v906 = vsel %vm762, %v901, %v905
      %v908 = vshrl.u32 %v333, 16
      %v910 = vrot.slane %v908, 4
      %v911 = vshll.u32 %v333, 16
      %v913 = vrot.slane %v911, 5
      %v914 = vor.u32 %v910, %v913
      %v915 = vrot.slane %v914, 4
      %v917 = vshll.u32 %v334, 16
      %v919 = vrot.slane %v917, 5
      %v920 = vsel %vm762, %v915, %v919
      %v921 = vshrl.u32 %v334, 16
      %v923 = vrot.slane %v921, 4
      %v924 = vor.u32 %v923, %v919
      %v925 = vrot.slane %v924, 4
      %v927 = vshll.u32 %v335, 16
      %v929 = vrot.slane %v927, 5
      %v930 = vsel %vm762, %v925, %v929
      %v932 = vshrl.u32 %v336, 16
      %v934 = vrot.slane %v932, 4
      %v935 = vshll.u32 %v336, 16
      %v937 = vrot.slane %v935, 5
      %v938 = vor.u32 %v934, %v937
      %v939 = vrot.slane %v938, 4
      %v941 = vshll.u32 %v337, 16
      %v943 = vrot.slane %v941, 5
      %v944 = vsel %vm762, %v939, %v943
      %v945 = vshrl.u32 %v337, 16
      %v947 = vrot.slane %v945, 4
      %v948 = vor.u32 %v947, %v943
      %v949 = vrot.slane %v948, 4
      %v951 = vshll.u32 %v338, 16
      %v953 = vrot.slane %v951, 5
      %v954 = vsel %vm762, %v949, %v953
      %v955 = vld [vmem:[%s1 + $0x40] sm:$0xf]
      %v956 = vld [vmem:[%s1 + $0x44] sm:$0xf]
      %v957 = vld [vmem:[%s1 + $0x48] sm:$0xf]
      %v958 = vld [vmem:[%s1 + $0x4c] sm:$0xf]
      %v959 = vld [vmem:[%s1 + $0x50] sm:$0xf]
      %v960 = vld [vmem:[%s1 + $0x54] sm:$0xf]
      %v961 = vld [vmem:[%s1 + $0x58] sm:$0xf]
      %v962 = vld [vmem:[%s1 + $0x5c] sm:$0xf]
      %v963 = vld [vmem:[%s1 + $0x60] sm:$0xf]
      %v964 = vld [vmem:[%s1 + $0x64] sm:$0xf]
      %v965 = vld [vmem:[%s1 + $0x68] sm:$0xf]
      %v966 = vld [vmem:[%s1 + $0x6c] sm:$0xf]
      %v967 = vld [vmem:[%s1 + $0x70] sm:$0xf]
      %v968 = vld [vmem:[%s1 + $0x74] sm:$0xf]
      %v969 = vld [vmem:[%s1 + $0x78] sm:$0xf]
      %v970 = vld [vmem:[%s1 + $0x7c] sm:$0xf]
      %v971 = vunpack.c.l.b16 %v776
      %v972 = vunpack.c.l.b16 %v786
      %v973 = vunpack.c.l.b16 %v800
      %v974 = vunpack.c.l.b16 %v810
      %v975 = vunpack.c.l.b16 %v824
      %v976 = vunpack.c.l.b16 %v834
      %v977 = vunpack.c.l.b16 %v848
      %v978 = vunpack.c.l.b16 %v858
      %v979 = vunpack.c.l.b16 %v872
      %v980 = vunpack.c.l.b16 %v882
      %v981 = vunpack.c.l.b16 %v896
      %v982 = vunpack.c.l.b16 %v906
      %v983 = vunpack.c.l.b16 %v920
      %v984 = vunpack.c.l.b16 %v930
      %v985 = vunpack.c.l.b16 %v944
      %v986 = vunpack.c.l.b16 %v954
      %v987 = vpack.c.b16 %v972, %v971
      %v988 = vpack.c.b16 %v974, %v973
      %v989 = vpack.c.b16 %v976, %v975
      %v990 = vpack.c.b16 %v978, %v977
      %v991 = vpack.c.b16 %v980, %v979
      %v992 = vpack.c.b16 %v982, %v981
      %v993 = vpack.c.b16 %v984, %v983
      %v994 = vpack.c.b16 %v986, %v985
      %v1019 = vunpack.c.l.b16 %v955
      %v1020 = vunpack.c.l.b16 %v956
      %v1021 = vunpack.c.l.b16 %v957
      %v1022 = vunpack.c.l.b16 %v958
      %v1023 = vunpack.c.l.b16 %v959
      %v1024 = vunpack.c.l.b16 %v960
      %v1025 = vunpack.c.l.b16 %v961
      %v1026 = vunpack.c.l.b16 %v962
      %v1027 = vunpack.c.l.b16 %v963
      %v1028 = vunpack.c.l.b16 %v964
      %v1029 = vunpack.c.l.b16 %v965
      %v1030 = vunpack.c.l.b16 %v966
      %v1031 = vunpack.c.l.b16 %v967
      %v1032 = vunpack.c.l.b16 %v968
      %v1033 = vunpack.c.l.b16 %v969
      %v1034 = vunpack.c.l.b16 %v970
      %v1035 = vpack.c.b16 %v1020, %v1019
      %v1036 = vpack.c.b16 %v1022, %v1021
      %v1037 = vpack.c.b16 %v1024, %v1023
      %v1038 = vpack.c.b16 %v1026, %v1025
      %v1039 = vpack.c.b16 %v1028, %v1027
      %v1040 = vpack.c.b16 %v1030, %v1029
      %v1041 = vpack.c.b16 %v1032, %v1031
      %v1042 = vpack.c.b16 %v1034, %v1033
      %1051 = vmatpush.bf16.msra.mxu0 %v1042
      %1052 = vmatpush.bf16.msra.mxu0 %v1041
      %1053 = vmatpush.bf16.msra.mxu0 %v1040
      %1054 = vmatpush.bf16.msra.mxu0 %v1039
      %1055 = vmatpush.bf16.msra.mxu0 %v1038
      %1056 = vmatpush.bf16.msra.mxu0 %v1037
      %1057 = vmatpush.bf16.msra.mxu0 %v1036
      %1058 = vmatpush.bf16.msra.mxu0 %v1035
      %1059 = vmatmul.bf16.gmra.mxu0 %v987
      %v1060 = vpop.f32.mrf.mxu0
      %v1061 = vadd.f32 0.0, %v1060
      %v1062 = vpop.f32.mrf.mxu0
      %v1063 = vadd.f32 0.0, %v1062
      %1064 = vmatmul.bf16.gmra.mxu0 %v988
      %v1065 = vpop.f32.mrf.mxu0
      %v1066 = vadd.f32 0.0, %v1065
      %v1067 = vpop.f32.mrf.mxu0
      %v1068 = vadd.f32 0.0, %v1067
      %1069 = vmatmul.bf16.gmra.mxu0 %v989
      %v1070 = vpop.f32.mrf.mxu0
      %v1071 = vadd.f32 0.0, %v1070
      %v1072 = vpop.f32.mrf.mxu0
      %v1073 = vadd.f32 0.0, %v1072
      %1074 = vmatmul.bf16.gmra.mxu0 %v990
      %v1075 = vpop.f32.mrf.mxu0
      %v1076 = vadd.f32 0.0, %v1075
      %v1077 = vpop.f32.mrf.mxu0
      %v1078 = vadd.f32 0.0, %v1077
      %1079 = vmatmul.bf16.gmra.mxu0 %v991
      %v1080 = vpop.f32.mrf.mxu0
      %v1081 = vadd.f32 0.0, %v1080
      %v1082 = vpop.f32.mrf.mxu0
      %v1083 = vadd.f32 0.0, %v1082
      %1084 = vmatmul.bf16.gmra.mxu0 %v992
      %v1085 = vpop.f32.mrf.mxu0
      %v1086 = vadd.f32 0.0, %v1085
      %v1087 = vpop.f32.mrf.mxu0
      %v1088 = vadd.f32 0.0, %v1087
      %1089 = vmatmul.bf16.gmra.mxu0 %v993
      %v1090 = vpop.f32.mrf.mxu0
      %v1091 = vadd.f32 0.0, %v1090
      %v1092 = vpop.f32.mrf.mxu0
      %v1093 = vadd.f32 0.0, %v1092
      %1094 = vmatmul.bf16.gmra.mxu0 %v994
      %v1095 = vpop.f32.mrf.mxu0
      %v1096 = vadd.f32 0.0, %v1095
      %v1097 = vpop.f32.mrf.mxu0
      %v1098 = vadd.f32 0.0, %v1097
      %1099 = vdwg.mxu0
      %v1100 = vadd.f32 %v744, %v1061
      %v1101 = vadd.f32 %v745, %v1063
      %v1102 = vadd.f32 %v746, %v1066
      %v1103 = vadd.f32 %v747, %v1068
      %v1104 = vadd.f32 %v748, %v1071
      %v1105 = vadd.f32 %v749, %v1073
      %v1106 = vadd.f32 %v750, %v1076
      %v1107 = vadd.f32 %v751, %v1078
      %v1108 = vadd.f32 %v752, %v1081
      %v1109 = vadd.f32 %v753, %v1083
      %v1110 = vadd.f32 %v754, %v1086
      %v1111 = vadd.f32 %v755, %v1088
      %v1112 = vadd.f32 %v756, %v1091
      %v1113 = vadd.f32 %v757, %v1093
      %v1114 = vadd.f32 %v758, %v1096
      %v1115 = vadd.f32 %v759, %v1098
      %v1117 = vshrl.u32 %v339, 16
      %v1119 = vrot.slane %v1117, 4
      %v1120 = vshll.u32 %v339, 16
      %v1122 = vrot.slane %v1120, 5
      %v1123 = vor.u32 %v1119, %v1122
      %v1124 = vrot.slane %v1123, 4
      %v1126 = vshll.u32 %v340, 16
      %v1128 = vrot.slane %v1126, 5
      %v1129 = vsel %vm762, %v1124, %v1128
      %v1130 = vshrl.u32 %v340, 16
      %v1132 = vrot.slane %v1130, 4
      %v1133 = vor.u32 %v1132, %v1128
      %v1134 = vrot.slane %v1133, 4
      %v1136 = vshll.u32 %v341, 16
      %v1138 = vrot.slane %v1136, 5
      %v1139 = vsel %vm762, %v1134, %v1138
      %v1140 = vld [vmem:[%s1 + $0x100] sm:$0xf]
      %v1141 = vld [vmem:[%s1 + $0x104] sm:$0xf]
      %v1142 = vld [vmem:[%s1 + $0x108] sm:$0xf]
      %v1143 = vld [vmem:[%s1 + $0x10c] sm:$0xf]
      %v1144 = vld [vmem:[%s1 + $0x110] sm:$0xf]
      %v1145 = vld [vmem:[%s1 + $0x114] sm:$0xf]
      %v1146 = vld [vmem:[%s1 + $0x118] sm:$0xf]
      %v1147 = vld [vmem:[%s1 + $0x11c] sm:$0xf]
      %v1148 = vld [vmem:[%s1 + $0x120] sm:$0xf]
      %v1149 = vld [vmem:[%s1 + $0x124] sm:$0xf]
      %v1150 = vld [vmem:[%s1 + $0x128] sm:$0xf]
      %v1151 = vld [vmem:[%s1 + $0x12c] sm:$0xf]
      %v1152 = vld [vmem:[%s1 + $0x130] sm:$0xf]
      %v1153 = vld [vmem:[%s1 + $0x134] sm:$0xf]
      %v1154 = vld [vmem:[%s1 + $0x138] sm:$0xf]
      %v1155 = vld [vmem:[%s1 + $0x13c] sm:$0xf]
      %v1156 = vunpack.c.l.b16 %v1129
      %v1157 = vunpack.c.l.b16 %v1139
      %v1158 = vpack.c.b16 %v1157, %v1156
      %v1176 = vunpack.c.l.b16 %v1140
      %v1177 = vunpack.c.l.b16 %v1141
      %v1178 = vunpack.c.l.b16 %v1142
      %v1179 = vunpack.c.l.b16 %v1143
      %v1180 = vunpack.c.l.b16 %v1144
      %v1181 = vunpack.c.l.b16 %v1145
      %v1182 = vunpack.c.l.b16 %v1146
      %v1183 = vunpack.c.l.b16 %v1147
      %v1184 = vunpack.c.l.b16 %v1148
      %v1185 = vunpack.c.l.b16 %v1149
      %v1186 = vunpack.c.l.b16 %v1150
      %v1187 = vunpack.c.l.b16 %v1151
      %v1188 = vunpack.c.l.b16 %v1152
      %v1189 = vunpack.c.l.b16 %v1153
      %v1190 = vunpack.c.l.b16 %v1154
      %v1191 = vunpack.c.l.b16 %v1155
      %v1192 = vpack.c.b16 %v1177, %v1176
      %v1193 = vpack.c.b16 %v1179, %v1178
      %v1194 = vpack.c.b16 %v1181, %v1180
      %v1195 = vpack.c.b16 %v1183, %v1182
      %v1196 = vpack.c.b16 %v1185, %v1184
      %v1197 = vpack.c.b16 %v1187, %v1186
      %v1198 = vpack.c.b16 %v1189, %v1188
      %v1199 = vpack.c.b16 %v1191, %v1190
      %1208 = vmatpush.bf16.msra.mxu0 %v1199
      %1209 = vmatpush.bf16.msra.mxu0 %v1198
      %1210 = vmatpush.bf16.msra.mxu0 %v1197
      %1211 = vmatpush.bf16.msra.mxu0 %v1196
      %1212 = vmatpush.bf16.msra.mxu0 %v1195
      %1213 = vmatpush.bf16.msra.mxu0 %v1194
      %1214 = vmatpush.bf16.msra.mxu0 %v1193
      %1215 = vmatpush.bf16.msra.mxu0 %v1192
      %1216 = vmatmul.bf16.gmra.mxu0 %v988
      %v1217 = vpop.f32.mrf.mxu0
      %v1218 = vadd.f32 0.0, %v1217
      %v1219 = vpop.f32.mrf.mxu0
      %v1220 = vadd.f32 0.0, %v1219
      %1221 = vmatmul.bf16.gmra.mxu0 %v989
      %v1222 = vpop.f32.mrf.mxu0
      %v1223 = vadd.f32 0.0, %v1222
      %v1224 = vpop.f32.mrf.mxu0
      %v1225 = vadd.f32 0.0, %v1224
      %1226 = vmatmul.bf16.gmra.mxu0 %v990
      %v1227 = vpop.f32.mrf.mxu0
      %v1228 = vadd.f32 0.0, %v1227
      %v1229 = vpop.f32.mrf.mxu0
      %v1230 = vadd.f32 0.0, %v1229
      %1231 = vmatmul.bf16.gmra.mxu0 %v991
      %v1232 = vpop.f32.mrf.mxu0
      %v1233 = vadd.f32 0.0, %v1232
      %v1234 = vpop.f32.mrf.mxu0
      %v1235 = vadd.f32 0.0, %v1234
      %1236 = vmatmul.bf16.gmra.mxu0 %v992
      %v1237 = vpop.f32.mrf.mxu0
      %v1238 = vadd.f32 0.0, %v1237
      %v1239 = vpop.f32.mrf.mxu0
      %v1240 = vadd.f32 0.0, %v1239
      %1241 = vmatmul.bf16.gmra.mxu0 %v993
      %v1242 = vpop.f32.mrf.mxu0
      %v1243 = vadd.f32 0.0, %v1242
      %v1244 = vpop.f32.mrf.mxu0
      %v1245 = vadd.f32 0.0, %v1244
      %1246 = vmatmul.bf16.gmra.mxu0 %v994
      %v1247 = vpop.f32.mrf.mxu0
      %v1248 = vadd.f32 0.0, %v1247
      %v1249 = vpop.f32.mrf.mxu0
      %v1250 = vadd.f32 0.0, %v1249
      %1251 = vmatmul.bf16.gmra.mxu0 %v1158
      %v1252 = vpop.f32.mrf.mxu0
      %v1253 = vadd.f32 0.0, %v1252
      %v1254 = vpop.f32.mrf.mxu0
      %v1255 = vadd.f32 0.0, %v1254
      %1256 = vdwg.mxu0
      %v1257 = vadd.f32 %v1100, %v1218
      %v1258 = vadd.f32 %v1101, %v1220
      %v1259 = vadd.f32 %v1102, %v1223
      %v1260 = vadd.f32 %v1103, %v1225
      %v1261 = vadd.f32 %v1104, %v1228
      %v1262 = vadd.f32 %v1105, %v1230
      %v1263 = vadd.f32 %v1106, %v1233
      %v1264 = vadd.f32 %v1107, %v1235
      %v1265 = vadd.f32 %v1108, %v1238
      %v1266 = vadd.f32 %v1109, %v1240
      %v1267 = vadd.f32 %v1110, %v1243
      %v1268 = vadd.f32 %v1111, %v1245
      %v1269 = vadd.f32 %v1112, %v1248
      %v1270 = vadd.f32 %v1113, %v1250
      %v1271 = vadd.f32 %v1114, %v1253
      %v1272 = vadd.f32 %v1115, %v1255
      %v1274 = vshrl.u32 %v342, 16
      %v1276 = vrot.slane %v1274, 4
      %v1277 = vshll.u32 %v342, 16
      %v1279 = vrot.slane %v1277, 5
      %v1280 = vor.u32 %v1276, %v1279
      %v1281 = vrot.slane %v1280, 4
      %v1283 = vshll.u32 %v343, 16
      %v1285 = vrot.slane %v1283, 5
      %v1286 = vsel %vm762, %v1281, %v1285
      %v1287 = vshrl.u32 %v343, 16
      %v1289 = vrot.slane %v1287, 4
      %v1290 = vor.u32 %v1289, %v1285
      %v1291 = vrot.slane %v1290, 4
      %v1293 = vshll.u32 %v344, 16
      %v1295 = vrot.slane %v1293, 5
      %v1296 = vsel %vm762, %v1291, %v1295
      %v1297 = vld [vmem:[%s1 + $0x1c0] sm:$0xf]
      %v1298 = vld [vmem:[%s1 + $0x1c4] sm:$0xf]
      %v1299 = vld [vmem:[%s1 + $0x1c8] sm:$0xf]
      %v1300 = vld [vmem:[%s1 + $0x1cc] sm:$0xf]
      %v1301 = vld [vmem:[%s1 + $0x1d0] sm:$0xf]
      %v1302 = vld [vmem:[%s1 + $0x1d4] sm:$0xf]
      %v1303 = vld [vmem:[%s1 + $0x1d8] sm:$0xf]
      %v1304 = vld [vmem:[%s1 + $0x1dc] sm:$0xf]
      %v1305 = vld [vmem:[%s1 + $0x1e0] sm:$0xf]
      %v1306 = vld [vmem:[%s1 + $0x1e4] sm:$0xf]
      %v1307 = vld [vmem:[%s1 + $0x1e8] sm:$0xf]
      %v1308 = vld [vmem:[%s1 + $0x1ec] sm:$0xf]
      %v1309 = vld [vmem:[%s1 + $0x1f0] sm:$0xf]
      %v1310 = vld [vmem:[%s1 + $0x1f4] sm:$0xf]
      %v1311 = vld [vmem:[%s1 + $0x1f8] sm:$0xf]
      %v1312 = vld [vmem:[%s1 + $0x1fc] sm:$0xf]
      %v1313 = vunpack.c.l.b16 %v1286
      %v1314 = vunpack.c.l.b16 %v1296
      %v1315 = vpack.c.b16 %v1314, %v1313
      %v1333 = vunpack.c.l.b16 %v1297
      %v1334 = vunpack.c.l.b16 %v1298
      %v1335 = vunpack.c.l.b16 %v1299
      %v1336 = vunpack.c.l.b16 %v1300
      %v1337 = vunpack.c.l.b16 %v1301
      %v1338 = vunpack.c.l.b16 %v1302
      %v1339 = vunpack.c.l.b16 %v1303
      %v1340 = vunpack.c.l.b16 %v1304
      %v1341 = vunpack.c.l.b16 %v1305
      %v1342 = vunpack.c.l.b16 %v1306
      %v1343 = vunpack.c.l.b16 %v1307
      %v1344 = vunpack.c.l.b16 %v1308
      %v1345 = vunpack.c.l.b16 %v1309
      %v1346 = vunpack.c.l.b16 %v1310
      %v1347 = vunpack.c.l.b16 %v1311
      %v1348 = vunpack.c.l.b16 %v1312
      %v1349 = vpack.c.b16 %v1334, %v1333
      %v1350 = vpack.c.b16 %v1336, %v1335
      %v1351 = vpack.c.b16 %v1338, %v1337
      %v1352 = vpack.c.b16 %v1340, %v1339
      %v1353 = vpack.c.b16 %v1342, %v1341
      %v1354 = vpack.c.b16 %v1344, %v1343
      %v1355 = vpack.c.b16 %v1346, %v1345
      %v1356 = vpack.c.b16 %v1348, %v1347
      %1365 = vmatpush.bf16.msra.mxu0 %v1356
      %1366 = vmatpush.bf16.msra.mxu0 %v1355
      %1367 = vmatpush.bf16.msra.mxu0 %v1354
      %1368 = vmatpush.bf16.msra.mxu0 %v1353
      %1369 = vmatpush.bf16.msra.mxu0 %v1352
      %1370 = vmatpush.bf16.msra.mxu0 %v1351
      %1371 = vmatpush.bf16.msra.mxu0 %v1350
      %1372 = vmatpush.bf16.msra.mxu0 %v1349
      %1373 = vmatmul.bf16.gmra.mxu0 %v989
      %v1374 = vpop.f32.mrf.mxu0
      %v1375 = vadd.f32 0.0, %v1374
      %v1376 = vpop.f32.mrf.mxu0
      %v1377 = vadd.f32 0.0, %v1376
      %1378 = vmatmul.bf16.gmra.mxu0 %v990
      %v1379 = vpop.f32.mrf.mxu0
      %v1380 = vadd.f32 0.0, %v1379
      %v1381 = vpop.f32.mrf.mxu0
      %v1382 = vadd.f32 0.0, %v1381
      %1383 = vmatmul.bf16.gmra.mxu0 %v991
      %v1384 = vpop.f32.mrf.mxu0
      %v1385 = vadd.f32 0.0, %v1384
      %v1386 = vpop.f32.mrf.mxu0
      %v1387 = vadd.f32 0.0, %v1386
      %1388 = vmatmul.bf16.gmra.mxu0 %v992
      %v1389 = vpop.f32.mrf.mxu0
      %v1390 = vadd.f32 0.0, %v1389
      %v1391 = vpop.f32.mrf.mxu0
      %v1392 = vadd.f32 0.0, %v1391
      %1393 = vmatmul.bf16.gmra.mxu0 %v993
      %v1394 = vpop.f32.mrf.mxu0
      %v1395 = vadd.f32 0.0, %v1394
      %v1396 = vpop.f32.mrf.mxu0
      %v1397 = vadd.f32 0.0, %v1396
      %1398 = vmatmul.bf16.gmra.mxu0 %v994
      %v1399 = vpop.f32.mrf.mxu0
      %v1400 = vadd.f32 0.0, %v1399
      %v1401 = vpop.f32.mrf.mxu0
      %v1402 = vadd.f32 0.0, %v1401
      %1403 = vmatmul.bf16.gmra.mxu0 %v1158
      %v1404 = vpop.f32.mrf.mxu0
      %v1405 = vadd.f32 0.0, %v1404
      %v1406 = vpop.f32.mrf.mxu0
      %v1407 = vadd.f32 0.0, %v1406
      %1408 = vmatmul.bf16.gmra.mxu0 %v1315
      %v1409 = vpop.f32.mrf.mxu0
      %v1410 = vadd.f32 0.0, %v1409
      %v1411 = vpop.f32.mrf.mxu0
      %v1412 = vadd.f32 0.0, %v1411
      %1413 = vdwg.mxu0
      %v1414 = vadd.f32 %v1257, %v1375
      %v1415 = vadd.f32 %v1258, %v1377
      %v1416 = vadd.f32 %v1259, %v1380
      %v1417 = vadd.f32 %v1260, %v1382
      %v1418 = vadd.f32 %v1261, %v1385
      %v1419 = vadd.f32 %v1262, %v1387
      %v1420 = vadd.f32 %v1263, %v1390
      %v1421 = vadd.f32 %v1264, %v1392
      %v1422 = vadd.f32 %v1265, %v1395
      %v1423 = vadd.f32 %v1266, %v1397
      %v1424 = vadd.f32 %v1267, %v1400
      %v1425 = vadd.f32 %v1268, %v1402
      %v1426 = vadd.f32 %v1269, %v1405
      %v1427 = vadd.f32 %v1270, %v1407
      %v1428 = vadd.f32 %v1271, %v1410
      %v1429 = vadd.f32 %v1272, %v1412
      %vm1438 = vcmask 1042432
      %vm1439 = vcmask 1046532
      %vm1440 = vmor %vm1438, %vm1439
      %v1441 = vrot.slane %v315, 5
      %v1442 = vrot.slane %v1441, 4
      %v1443 = vrot.slane %v316, 5
      %v1444 = vsel %vm1440, %v1442, %v1443
      %v1445 = vrot.slane %v1443, 4
      %v1446 = vrot.slane %v317, 5
      %v1447 = vsel %vm1440, %v1445, %v1446
      %v1448 = vrot.slane %v318, 5
      %v1449 = vrot.slane %v1448, 4
      %v1450 = vrot.slane %v319, 5
      %v1451 = vsel %vm1440, %v1449, %v1450
      %v1452 = vrot.slane %v1450, 4
      %v1453 = vrot.slane %v320, 5
      %v1454 = vsel %vm1440, %v1452, %v1453
      %v1455 = vrot.slane %v321, 5
      %v1456 = vrot.slane %v1455, 4
      %v1457 = vrot.slane %v322, 5
      %v1458 = vsel %vm1440, %v1456, %v1457
      %v1459 = vrot.slane %v1457, 4
      %v1460 = vrot.slane %v323, 5
      %v1461 = vsel %vm1440, %v1459, %v1460
      %v1462 = vrot.slane %v324, 5
      %v1463 = vrot.slane %v1462, 4
      %v1464 = vrot.slane %v325, 5
      %v1465 = vsel %vm1440, %v1463, %v1464
      %v1466 = vrot.slane %v1464, 4
      %v1467 = vrot.slane %v326, 5
      %v1468 = vsel %vm1440, %v1466, %v1467
      %v1469 = vrot.slane %v327, 5
      %v1470 = vrot.slane %v1469, 4
      %v1471 = vrot.slane %v328, 5
      %v1472 = vsel %vm1440, %v1470, %v1471
      %v1473 = vrot.slane %v1471, 4
      %v1474 = vrot.slane %v329, 5
      %v1475 = vsel %vm1440, %v1473, %v1474
      %v1476 = vrot.slane %v330, 5
      %v1477 = vrot.slane %v1476, 4
      %v1478 = vrot.slane %v331, 5
      %v1479 = vsel %vm1440, %v1477, %v1478
      %v1480 = vrot.slane %v1478, 4
      %v1481 = vrot.slane %v332, 5
      %v1482 = vsel %vm1440, %v1480, %v1481
      %v1483 = vrot.slane %v333, 5
      %v1484 = vrot.slane %v1483, 4
      %v1485 = vrot.slane %v334, 5
      %v1486 = vsel %vm1440, %v1484, %v1485
      %v1487 = vrot.slane %v1485, 4
      %v1488 = vrot.slane %v335, 5
      %v1489 = vsel %vm1440, %v1487, %v1488
      %v1490 = vrot.slane %v336, 5
      %v1491 = vrot.slane %v1490, 4
      %v1492 = vrot.slane %v337, 5
      %v1493 = vsel %vm1440, %v1491, %v1492
      %v1494 = vrot.slane %v1492, 4
      %v1495 = vrot.slane %v338, 5
      %v1496 = vsel %vm1440, %v1494, %v1495
      %v1497 = vld [vmem:[%s1 + $0x80] sm:$0xf]
      %v1498 = vld [vmem:[%s1 + $0x84] sm:$0xf]
      %v1499 = vld [vmem:[%s1 + $0x88] sm:$0xf]
      %v1500 = vld [vmem:[%s1 + $0x8c] sm:$0xf]
      %v1501 = vld [vmem:[%s1 + $0x90] sm:$0xf]
      %v1502 = vld [vmem:[%s1 + $0x94] sm:$0xf]
      %v1503 = vld [vmem:[%s1 + $0x98] sm:$0xf]
      %v1504 = vld [vmem:[%s1 + $0x9c] sm:$0xf]
      %v1505 = vld [vmem:[%s1 + $0xa0] sm:$0xf]
      %v1506 = vld [vmem:[%s1 + $0xa4] sm:$0xf]
      %v1507 = vld [vmem:[%s1 + $0xa8] sm:$0xf]
      %v1508 = vld [vmem:[%s1 + $0xac] sm:$0xf]
      %v1509 = vld [vmem:[%s1 + $0xb0] sm:$0xf]
      %v1510 = vld [vmem:[%s1 + $0xb4] sm:$0xf]
      %v1511 = vld [vmem:[%s1 + $0xb8] sm:$0xf]
      %v1512 = vld [vmem:[%s1 + $0xbc] sm:$0xf]
      %v1513 = vunpack.c.l.b16 %v1444
      %v1514 = vunpack.c.l.b16 %v1447
      %v1515 = vunpack.c.l.b16 %v1451
      %v1516 = vunpack.c.l.b16 %v1454
      %v1517 = vunpack.c.l.b16 %v1458
      %v1518 = vunpack.c.l.b16 %v1461
      %v1519 = vunpack.c.l.b16 %v1465
      %v1520 = vunpack.c.l.b16 %v1468
      %v1521 = vunpack.c.l.b16 %v1472
      %v1522 = vunpack.c.l.b16 %v1475
      %v1523 = vunpack.c.l.b16 %v1479
      %v1524 = vunpack.c.l.b16 %v1482
      %v1525 = vunpack.c.l.b16 %v1486
      %v1526 = vunpack.c.l.b16 %v1489
      %v1527 = vunpack.c.l.b16 %v1493
      %v1528 = vunpack.c.l.b16 %v1496
      %v1529 = vpack.c.b16 %v1514, %v1513
      %v1530 = vpack.c.b16 %v1516, %v1515
      %v1531 = vpack.c.b16 %v1518, %v1517
      %v1532 = vpack.c.b16 %v1520, %v1519
      %v1533 = vpack.c.b16 %v1522, %v1521
      %v1534 = vpack.c.b16 %v1524, %v1523
      %v1535 = vpack.c.b16 %v1526, %v1525
      %v1536 = vpack.c.b16 %v1528, %v1527
      %v1561 = vunpack.c.l.b16 %v1497
      %v1562 = vunpack.c.l.b16 %v1498
      %v1563 = vunpack.c.l.b16 %v1499
      %v1564 = vunpack.c.l.b16 %v1500
      %v1565 = vunpack.c.l.b16 %v1501
      %v1566 = vunpack.c.l.b16 %v1502
      %v1567 = vunpack.c.l.b16 %v1503
      %v1568 = vunpack.c.l.b16 %v1504
      %v1569 = vunpack.c.l.b16 %v1505
      %v1570 = vunpack.c.l.b16 %v1506
      %v1571 = vunpack.c.l.b16 %v1507
      %v1572 = vunpack.c.l.b16 %v1508
      %v1573 = vunpack.c.l.b16 %v1509
      %v1574 = vunpack.c.l.b16 %v1510
      %v1575 = vunpack.c.l.b16 %v1511
      %v1576 = vunpack.c.l.b16 %v1512
      %v1577 = vpack.c.b16 %v1562, %v1561
      %v1578 = vpack.c.b16 %v1564, %v1563
      %v1579 = vpack.c.b16 %v1566, %v1565
      %v1580 = vpack.c.b16 %v1568, %v1567
      %v1581 = vpack.c.b16 %v1570, %v1569
      %v1582 = vpack.c.b16 %v1572, %v1571
      %v1583 = vpack.c.b16 %v1574, %v1573
      %v1584 = vpack.c.b16 %v1576, %v1575
      %1593 = vmatpush.bf16.msra.mxu0 %v1584
      %1594 = vmatpush.bf16.msra.mxu0 %v1583
      %1595 = vmatpush.bf16.msra.mxu0 %v1582
      %1596 = vmatpush.bf16.msra.mxu0 %v1581
      %1597 = vmatpush.bf16.msra.mxu0 %v1580
      %1598 = vmatpush.bf16.msra.mxu0 %v1579
      %1599 = vmatpush.bf16.msra.mxu0 %v1578
      %1600 = vmatpush.bf16.msra.mxu0 %v1577
      %1601 = vmatmul.bf16.gmra.mxu0 %v1529
      %v1602 = vpop.f32.mrf.mxu0
      %v1603 = vadd.f32 0.0, %v1602
      %v1604 = vpop.f32.mrf.mxu0
      %v1605 = vadd.f32 0.0, %v1604
      %1606 = vmatmul.bf16.gmra.mxu0 %v1530
      %v1607 = vpop.f32.mrf.mxu0
      %v1608 = vadd.f32 0.0, %v1607
      %v1609 = vpop.f32.mrf.mxu0
      %v1610 = vadd.f32 0.0, %v1609
      %1611 = vmatmul.bf16.gmra.mxu0 %v1531
      %v1612 = vpop.f32.mrf.mxu0
      %v1613 = vadd.f32 0.0, %v1612
      %v1614 = vpop.f32.mrf.mxu0
      %v1615 = vadd.f32 0.0, %v1614
      %1616 = vmatmul.bf16.gmra.mxu0 %v1532
      %v1617 = vpop.f32.mrf.mxu0
      %v1618 = vadd.f32 0.0, %v1617
      %v1619 = vpop.f32.mrf.mxu0
      %v1620 = vadd.f32 0.0, %v1619
      %1621 = vmatmul.bf16.gmra.mxu0 %v1533
      %v1622 = vpop.f32.mrf.mxu0
      %v1623 = vadd.f32 0.0, %v1622
      %v1624 = vpop.f32.mrf.mxu0
      %v1625 = vadd.f32 0.0, %v1624
      %1626 = vmatmul.bf16.gmra.mxu0 %v1534
      %v1627 = vpop.f32.mrf.mxu0
      %v1628 = vadd.f32 0.0, %v1627
      %v1629 = vpop.f32.mrf.mxu0
      %v1630 = vadd.f32 0.0, %v1629
      %1631 = vmatmul.bf16.gmra.mxu0 %v1535
      %v1632 = vpop.f32.mrf.mxu0
      %v1633 = vadd.f32 0.0, %v1632
      %v1634 = vpop.f32.mrf.mxu0
      %v1635 = vadd.f32 0.0, %v1634
      %1636 = vmatmul.bf16.gmra.mxu0 %v1536
      %v1637 = vpop.f32.mrf.mxu0
      %v1638 = vadd.f32 0.0, %v1637
      %v1639 = vpop.f32.mrf.mxu0
      %v1640 = vadd.f32 0.0, %v1639
      %1641 = vdwg.mxu0
      %v1642 = vadd.f32 %v1414, %v1603
      %v1643 = vadd.f32 %v1415, %v1605
      %v1644 = vadd.f32 %v1416, %v1608
      %v1645 = vadd.f32 %v1417, %v1610
      %v1646 = vadd.f32 %v1418, %v1613
      %v1647 = vadd.f32 %v1419, %v1615
      %v1648 = vadd.f32 %v1420, %v1618
      %v1649 = vadd.f32 %v1421, %v1620
      %v1650 = vadd.f32 %v1422, %v1623
      %v1651 = vadd.f32 %v1423, %v1625
      %v1652 = vadd.f32 %v1424, %v1628
      %v1653 = vadd.f32 %v1425, %v1630
      %v1654 = vadd.f32 %v1426, %v1633
      %v1655 = vadd.f32 %v1427, %v1635
      %v1656 = vadd.f32 %v1428, %v1638
      %v1657 = vadd.f32 %v1429, %v1640
      %v1659 = vrot.slane %v339, 5
      %v1660 = vrot.slane %v1659, 4
      %v1661 = vrot.slane %v340, 5
      %v1662 = vsel %vm1440, %v1660, %v1661
      %v1663 = vrot.slane %v1661, 4
      %v1664 = vrot.slane %v341, 5
      %v1665 = vsel %vm1440, %v1663, %v1664
      %v1666 = vld [vmem:[%s1 + $0x140] sm:$0xf]
      %v1667 = vld [vmem:[%s1 + $0x144] sm:$0xf]
      %v1668 = vld [vmem:[%s1 + $0x148] sm:$0xf]
      %v1669 = vld [vmem:[%s1 + $0x14c] sm:$0xf]
      %v1670 = vld [vmem:[%s1 + $0x150] sm:$0xf]
      %v1671 = vld [vmem:[%s1 + $0x154] sm:$0xf]
      %v1672 = vld [vmem:[%s1 + $0x158] sm:$0xf]
      %v1673 = vld [vmem:[%s1 + $0x15c] sm:$0xf]
      %v1674 = vld [vmem:[%s1 + $0x160] sm:$0xf]
      %v1675 = vld [vmem:[%s1 + $0x164] sm:$0xf]
      %v1676 = vld [vmem:[%s1 + $0x168] sm:$0xf]
      %v1677 = vld [vmem:[%s1 + $0x16c] sm:$0xf]
      %v1678 = vld [vmem:[%s1 + $0x170] sm:$0xf]
      %v1679 = vld [vmem:[%s1 + $0x174] sm:$0xf]
      %v1680 = vld [vmem:[%s1 + $0x178] sm:$0xf]
      %v1681 = vld [vmem:[%s1 + $0x17c] sm:$0xf]
      %v1682 = vunpack.c.l.b16 %v1662
      %v1683 = vunpack.c.l.b16 %v1665
      %v1684 = vpack.c.b16 %v1683, %v1682
      %v1702 = vunpack.c.l.b16 %v1666
      %v1703 = vunpack.c.l.b16 %v1667
      %v1704 = vunpack.c.l.b16 %v1668
      %v1705 = vunpack.c.l.b16 %v1669
      %v1706 = vunpack.c.l.b16 %v1670
      %v1707 = vunpack.c.l.b16 %v1671
      %v1708 = vunpack.c.l.b16 %v1672
      %v1709 = vunpack.c.l.b16 %v1673
      %v1710 = vunpack.c.l.b16 %v1674
      %v1711 = vunpack.c.l.b16 %v1675
      %v1712 = vunpack.c.l.b16 %v1676
      %v1713 = vunpack.c.l.b16 %v1677
      %v1714 = vunpack.c.l.b16 %v1678
      %v1715 = vunpack.c.l.b16 %v1679
      %v1716 = vunpack.c.l.b16 %v1680
      %v1717 = vunpack.c.l.b16 %v1681
      %v1718 = vpack.c.b16 %v1703, %v1702
      %v1719 = vpack.c.b16 %v1705, %v1704
      %v1720 = vpack.c.b16 %v1707, %v1706
      %v1721 = vpack.c.b16 %v1709, %v1708
      %v1722 = vpack.c.b16 %v1711, %v1710
      %v1723 = vpack.c.b16 %v1713, %v1712
      %v1724 = vpack.c.b16 %v1715, %v1714
      %v1725 = vpack.c.b16 %v1717, %v1716
      %1734 = vmatpush.bf16.msra.mxu0 %v1725
      %1735 = vmatpush.bf16.msra.mxu0 %v1724
      %1736 = vmatpush.bf16.msra.mxu0 %v1723
      %1737 = vmatpush.bf16.msra.mxu0 %v1722
      %1738 = vmatpush.bf16.msra.mxu0 %v1721
      %1739 = vmatpush.bf16.msra.mxu0 %v1720
      %1740 = vmatpush.bf16.msra.mxu0 %v1719
      %1741 = vmatpush.bf16.msra.mxu0 %v1718
      %1742 = vmatmul.bf16.gmra.mxu0 %v1530
      %v1743 = vpop.f32.mrf.mxu0
      %v1744 = vadd.f32 0.0, %v1743
      %v1745 = vpop.f32.mrf.mxu0
      %v1746 = vadd.f32 0.0, %v1745
      %1747 = vmatmul.bf16.gmra.mxu0 %v1531
      %v1748 = vpop.f32.mrf.mxu0
      %v1749 = vadd.f32 0.0, %v1748
      %v1750 = vpop.f32.mrf.mxu0
      %v1751 = vadd.f32 0.0, %v1750
      %1752 = vmatmul.bf16.gmra.mxu0 %v1532
      %v1753 = vpop.f32.mrf.mxu0
      %v1754 = vadd.f32 0.0, %v1753
      %v1755 = vpop.f32.mrf.mxu0
      %v1756 = vadd.f32 0.0, %v1755
      %1757 = vmatmul.bf16.gmra.mxu0 %v1533
      %v1758 = vpop.f32.mrf.mxu0
      %v1759 = vadd.f32 0.0, %v1758
      %v1760 = vpop.f32.mrf.mxu0
      %v1761 = vadd.f32 0.0, %v1760
      %1762 = vmatmul.bf16.gmra.mxu0 %v1534
      %v1763 = vpop.f32.mrf.mxu0
      %v1764 = vadd.f32 0.0, %v1763
      %v1765 = vpop.f32.mrf.mxu0
      %v1766 = vadd.f32 0.0, %v1765
      %1767 = vmatmul.bf16.gmra.mxu0 %v1535
      %v1768 = vpop.f32.mrf.mxu0
      %v1769 = vadd.f32 0.0, %v1768
      %v1770 = vpop.f32.mrf.mxu0
      %v1771 = vadd.f32 0.0, %v1770
      %1772 = vmatmul.bf16.gmra.mxu0 %v1536
      %v1773 = vpop.f32.mrf.mxu0
      %v1774 = vadd.f32 0.0, %v1773
      %v1775 = vpop.f32.mrf.mxu0
      %v1776 = vadd.f32 0.0, %v1775
      %1777 = vmatmul.bf16.gmra.mxu0 %v1684
      %v1778 = vpop.f32.mrf.mxu0
      %v1779 = vadd.f32 0.0, %v1778
      %v1780 = vpop.f32.mrf.mxu0
      %v1781 = vadd.f32 0.0, %v1780
      %1782 = vdwg.mxu0
      %v1783 = vadd.f32 %v1642, %v1744
      %v1784 = vadd.f32 %v1643, %v1746
      %v1785 = vadd.f32 %v1644, %v1749
      %v1786 = vadd.f32 %v1645, %v1751
      %v1787 = vadd.f32 %v1646, %v1754
      %v1788 = vadd.f32 %v1647, %v1756
      %v1789 = vadd.f32 %v1648, %v1759
      %v1790 = vadd.f32 %v1649, %v1761
      %v1791 = vadd.f32 %v1650, %v1764
      %v1792 = vadd.f32 %v1651, %v1766
      %v1793 = vadd.f32 %v1652, %v1769
      %v1794 = vadd.f32 %v1653, %v1771
      %v1795 = vadd.f32 %v1654, %v1774
      %v1796 = vadd.f32 %v1655, %v1776
      %v1797 = vadd.f32 %v1656, %v1779
      %v1798 = vadd.f32 %v1657, %v1781
      %v1800 = vrot.slane %v342, 5
      %v1801 = vrot.slane %v1800, 4
      %v1802 = vrot.slane %v343, 5
      %v1803 = vsel %vm1440, %v1801, %v1802
      %v1804 = vrot.slane %v1802, 4
      %v1805 = vrot.slane %v344, 5
      %v1806 = vsel %vm1440, %v1804, %v1805
      %v1807 = vld [vmem:[%s1 + $0x200] sm:$0xf]
      %v1808 = vld [vmem:[%s1 + $0x204] sm:$0xf]
      %v1809 = vld [vmem:[%s1 + $0x208] sm:$0xf]
      %v1810 = vld [vmem:[%s1 + $0x20c] sm:$0xf]
      %v1811 = vld [vmem:[%s1 + $0x210] sm:$0xf]
      %v1812 = vld [vmem:[%s1 + $0x214] sm:$0xf]
      %v1813 = vld [vmem:[%s1 + $0x218] sm:$0xf]
      %v1814 = vld [vmem:[%s1 + $0x21c] sm:$0xf]
      %v1815 = vld [vmem:[%s1 + $0x220] sm:$0xf]
      %v1816 = vld [vmem:[%s1 + $0x224] sm:$0xf]
      %v1817 = vld [vmem:[%s1 + $0x228] sm:$0xf]
      %v1818 = vld [vmem:[%s1 + $0x22c] sm:$0xf]
      %v1819 = vld [vmem:[%s1 + $0x230] sm:$0xf]
      %v1820 = vld [vmem:[%s1 + $0x234] sm:$0xf]
      %v1821 = vld [vmem:[%s1 + $0x238] sm:$0xf]
      %v1822 = vld [vmem:[%s1 + $0x23c] sm:$0xf]
      %v1823 = vunpack.c.l.b16 %v1803
      %v1824 = vunpack.c.l.b16 %v1806
      %v1825 = vpack.c.b16 %v1824, %v1823
      %v1843 = vunpack.c.l.b16 %v1807
      %v1844 = vunpack.c.l.b16 %v1808
      %v1845 = vunpack.c.l.b16 %v1809
      %v1846 = vunpack.c.l.b16 %v1810
      %v1847 = vunpack.c.l.b16 %v1811
      %v1848 = vunpack.c.l.b16 %v1812
      %v1849 = vunpack.c.l.b16 %v1813
      %v1850 = vunpack.c.l.b16 %v1814
      %v1851 = vunpack.c.l.b16 %v1815
      %v1852 = vunpack.c.l.b16 %v1816
      %v1853 = vunpack.c.l.b16 %v1817
      %v1854 = vunpack.c.l.b16 %v1818
      %v1855 = vunpack.c.l.b16 %v1819
      %v1856 = vunpack.c.l.b16 %v1820
      %v1857 = vunpack.c.l.b16 %v1821
      %v1858 = vunpack.c.l.b16 %v1822
      %v1859 = vpack.c.b16 %v1844, %v1843
      %v1860 = vpack.c.b16 %v1846, %v1845
      %v1861 = vpack.c.b16 %v1848, %v1847
      %v1862 = vpack.c.b16 %v1850, %v1849
      %v1863 = vpack.c.b16 %v1852, %v1851
      %v1864 = vpack.c.b16 %v1854, %v1853
      %v1865 = vpack.c.b16 %v1856, %v1855
      %v1866 = vpack.c.b16 %v1858, %v1857
      %1875 = vmatpush.bf16.msra.mxu0 %v1866
      %1876 = vmatpush.bf16.msra.mxu0 %v1865
      %1877 = vmatpush.bf16.msra.mxu0 %v1864
      %1878 = vmatpush.bf16.msra.mxu0 %v1863
      %1879 = vmatpush.bf16.msra.mxu0 %v1862
      %1880 = vmatpush.bf16.msra.mxu0 %v1861
      %1881 = vmatpush.bf16.msra.mxu0 %v1860
      %1882 = vmatpush.bf16.msra.mxu0 %v1859
      %1883 = vmatmul.bf16.gmra.mxu0 %v1531
      %v1884 = vpop.f32.mrf.mxu0
      %v1885 = vadd.f32 0.0, %v1884
      %v1886 = vpop.f32.mrf.mxu0
      %v1887 = vadd.f32 0.0, %v1886
      %1888 = vmatmul.bf16.gmra.mxu0 %v1532
      %v1889 = vpop.f32.mrf.mxu0
      %v1890 = vadd.f32 0.0, %v1889
      %v1891 = vpop.f32.mrf.mxu0
      %v1892 = vadd.f32 0.0, %v1891
      %1893 = vmatmul.bf16.gmra.mxu0 %v1533
      %v1894 = vpop.f32.mrf.mxu0
      %v1895 = vadd.f32 0.0, %v1894
      %v1896 = vpop.f32.mrf.mxu0
      %v1897 = vadd.f32 0.0, %v1896
      %1898 = vmatmul.bf16.gmra.mxu0 %v1534
      %v1899 = vpop.f32.mrf.mxu0
      %v1900 = vadd.f32 0.0, %v1899
      %v1901 = vpop.f32.mrf.mxu0
      %v1902 = vadd.f32 0.0, %v1901
      %1903 = vmatmul.bf16.gmra.mxu0 %v1535
      %v1904 = vpop.f32.mrf.mxu0
      %v1905 = vadd.f32 0.0, %v1904
      %v1906 = vpop.f32.mrf.mxu0
      %v1907 = vadd.f32 0.0, %v1906
      %1908 = vmatmul.bf16.gmra.mxu0 %v1536
      %v1909 = vpop.f32.mrf.mxu0
      %v1910 = vadd.f32 0.0, %v1909
      %v1911 = vpop.f32.mrf.mxu0
      %v1912 = vadd.f32 0.0, %v1911
      %1913 = vmatmul.bf16.gmra.mxu0 %v1684
      %v1914 = vpop.f32.mrf.mxu0
      %v1915 = vadd.f32 0.0, %v1914
      %v1916 = vpop.f32.mrf.mxu0
      %v1917 = vadd.f32 0.0, %v1916
      %1918 = vmatmul.bf16.gmra.mxu0 %v1825
      %v1919 = vpop.f32.mrf.mxu0
      %v1920 = vadd.f32 0.0, %v1919
      %v1921 = vpop.f32.mrf.mxu0
      %v1922 = vadd.f32 0.0, %v1921
      %1923 = vdwg.mxu0
      %v1924 = vadd.f32 %v1783, %v1885
      %v1925 = vadd.f32 %v1784, %v1887
      %v1926 = vadd.f32 %v1785, %v1890
      %v1927 = vadd.f32 %v1786, %v1892
      %v1928 = vadd.f32 %v1787, %v1895
      %v1929 = vadd.f32 %v1788, %v1897
      %v1930 = vadd.f32 %v1789, %v1900
      %v1931 = vadd.f32 %v1790, %v1902
      %v1932 = vadd.f32 %v1791, %v1905
      %v1933 = vadd.f32 %v1792, %v1907
      %v1934 = vadd.f32 %v1793, %v1910
      %v1935 = vadd.f32 %v1794, %v1912
      %v1936 = vadd.f32 %v1795, %v1915
      %v1937 = vadd.f32 %v1796, %v1917
      %v1938 = vadd.f32 %v1797, %v1920
      %v1939 = vadd.f32 %v1798, %v1922
      %v1940 = vld [vmem:[%s2] sm:$0x1]
      %v1942 = vperm.slane %v1940, 0
      %v1944 = vadd.f32 %v1924, %v1942
      %v1945 = vadd.f32 %v1925, %v1942
      %v1946 = vadd.f32 %v1926, %v1942
      %v1947 = vadd.f32 %v1927, %v1942
      %v1948 = vadd.f32 %v1928, %v1942
      %v1949 = vadd.f32 %v1929, %v1942
      %v1950 = vadd.f32 %v1930, %v1942
      %v1951 = vadd.f32 %v1931, %v1942
      %v1952 = vadd.f32 %v1932, %v1942
      %v1953 = vadd.f32 %v1933, %v1942
      %v1954 = vadd.f32 %v1934, %v1942
      %v1955 = vadd.f32 %v1935, %v1942
      %v1956 = vadd.f32 %v1936, %v1942
      %v1957 = vadd.f32 %v1937, %v1942
      %v1958 = vadd.f32 %v1938, %v1942
      %v1959 = vadd.f32 %v1939, %v1942
      %v1960 = vxor.u32 %v1944, 2147483648
      %v1961 = vxor.u32 %v1945, 2147483648
      %v1962 = vxor.u32 %v1946, 2147483648
      %v1963 = vxor.u32 %v1947, 2147483648
      %v1964 = vxor.u32 %v1948, 2147483648
      %v1965 = vxor.u32 %v1949, 2147483648
      %v1966 = vxor.u32 %v1950, 2147483648
      %v1967 = vxor.u32 %v1951, 2147483648
      %v1968 = vxor.u32 %v1952, 2147483648
      %v1969 = vxor.u32 %v1953, 2147483648
      %v1970 = vxor.u32 %v1954, 2147483648
      %v1971 = vxor.u32 %v1955, 2147483648
      %v1972 = vxor.u32 %v1956, 2147483648
      %v1973 = vxor.u32 %v1957, 2147483648
      %v1974 = vxor.u32 %v1958, 2147483648
      %v1975 = vxor.u32 %v1959, 2147483648
      %v1976 = vmul.f32 %v1960, 1.442695
      %v1977 = vpow.pop %v1976
      %v1978 = vmul.f32 %v1961, 1.442695
      %v1979 = vpow.pop %v1978
      %v1980 = vmul.f32 %v1962, 1.442695
      %v1981 = vpow.pop %v1980
      %v1982 = vmul.f32 %v1963, 1.442695
      %v1983 = vpow.pop %v1982
      %v1984 = vmul.f32 %v1964, 1.442695
      %v1985 = vpow.pop %v1984
      %v1986 = vmul.f32 %v1965, 1.442695
      %v1987 = vpow.pop %v1986
      %v1988 = vmul.f32 %v1966, 1.442695
      %v1989 = vpow.pop %v1988
      %v1990 = vmul.f32 %v1967, 1.442695
      %v1991 = vpow.pop %v1990
      %v1992 = vmul.f32 %v1968, 1.442695
      %v1993 = vpow.pop %v1992
      %v1994 = vmul.f32 %v1969, 1.442695
      %v1995 = vpow.pop %v1994
      %v1996 = vmul.f32 %v1970, 1.442695
      %v1997 = vpow.pop %v1996
      %v1998 = vmul.f32 %v1971, 1.442695
      %v1999 = vpow.pop %v1998
      %v2000 = vmul.f32 %v1972, 1.442695
      %v2001 = vpow.pop %v2000
      %v2002 = vmul.f32 %v1973, 1.442695
      %v2003 = vpow.pop %v2002
      %v2004 = vmul.f32 %v1974, 1.442695
      %v2005 = vpow.pop %v2004
      %v2006 = vmul.f32 %v1975, 1.442695
      %v2007 = vpow.pop %v2006
      %v2008 = vadd.f32 %v1977, 1.0
      %v2009 = vadd.f32 %v1979, 1.0
      %v2010 = vadd.f32 %v1981, 1.0
      %v2011 = vadd.f32 %v1983, 1.0
      %v2012 = vadd.f32 %v1985, 1.0
      %v2013 = vadd.f32 %v1987, 1.0
      %v2014 = vadd.f32 %v1989, 1.0
      %v2015 = vadd.f32 %v1991, 1.0
      %v2016 = vadd.f32 %v1993, 1.0
      %v2017 = vadd.f32 %v1995, 1.0
      %v2018 = vadd.f32 %v1997, 1.0
      %v2019 = vadd.f32 %v1999, 1.0
      %v2020 = vadd.f32 %v2001, 1.0
      %v2021 = vadd.f32 %v2003, 1.0
      %v2022 = vadd.f32 %v2005, 1.0
      %v2023 = vadd.f32 %v2007, 1.0
      %v2024 = vrcp.pop %v2008
      %v2025 = vmul.f32 %v2008, %v2024
      %v2026 = vsub.f32 1.0, %v2025
      %v2027 = vmul.f32 %v2024, %v2026
      %v2028 = vadd.f32 %v2024, %v2027
      %vm2029 = vweird.f32 %v2008
      %vm2030 = vweird.f32 %v2024
      %vm2031 = vmor %vm2029, %vm2030
      %v2032 = vsel %vm2031, %v2024, %v2028
      %v2033 = vand.u32 2147483647, %v2008
      %vm2034 = vcmp.eq.f32.partialorder %v2033, 8.507059e+37
      %v2035 = vand.u32 %v2008, 2147483648
      %v2036 = vor.u32 1.1754944e-38, %v2035
      %v2037 = vsel %vm2034, %v2036, %v2032
      %v2038 = vmul.f32 1.0, %v2037
      %v2039 = vrcp.pop %v2009
      %v2040 = vmul.f32 %v2009, %v2039
      %v2041 = vsub.f32 1.0, %v2040
      %v2042 = vmul.f32 %v2039, %v2041
      %v2043 = vadd.f32 %v2039, %v2042
      %vm2044 = vweird.f32 %v2009
      %vm2045 = vweird.f32 %v2039
      %vm2046 = vmor %vm2044, %vm2045
      %v2047 = vsel %vm2046, %v2039, %v2043
      %v2048 = vand.u32 2147483647, %v2009
      %vm2049 = vcmp.eq.f32.partialorder %v2048, 8.507059e+37
      %v2050 = vand.u32 %v2009, 2147483648
      %v2051 = vor.u32 1.1754944e-38, %v2050
      %v2052 = vsel %vm2049, %v2051, %v2047
      %v2053 = vmul.f32 1.0, %v2052
      %v2054 = vrcp.pop %v2010
      %v2055 = vmul.f32 %v2010, %v2054
      %v2056 = vsub.f32 1.0, %v2055
      %v2057 = vmul.f32 %v2054, %v2056
      %v2058 = vadd.f32 %v2054, %v2057
      %vm2059 = vweird.f32 %v2010
      %vm2060 = vweird.f32 %v2054
      %vm2061 = vmor %vm2059, %vm2060
      %v2062 = vsel %vm2061, %v2054, %v2058
      %v2063 = vand.u32 2147483647, %v2010
      %vm2064 = vcmp.eq.f32.partialorder %v2063, 8.507059e+37
      %v2065 = vand.u32 %v2010, 2147483648
      %v2066 = vor.u32 1.1754944e-38, %v2065
      %v2067 = vsel %vm2064, %v2066, %v2062
      %v2068 = vmul.f32 1.0, %v2067
      %v2069 = vrcp.pop %v2011
      %v2070 = vmul.f32 %v2011, %v2069
      %v2071 = vsub.f32 1.0, %v2070
      %v2072 = vmul.f32 %v2069, %v2071
      %v2073 = vadd.f32 %v2069, %v2072
      %vm2074 = vweird.f32 %v2011
      %vm2075 = vweird.f32 %v2069
      %vm2076 = vmor %vm2074, %vm2075
      %v2077 = vsel %vm2076, %v2069, %v2073
      %v2078 = vand.u32 2147483647, %v2011
      %vm2079 = vcmp.eq.f32.partialorder %v2078, 8.507059e+37
      %v2080 = vand.u32 %v2011, 2147483648
      %v2081 = vor.u32 1.1754944e-38, %v2080
      %v2082 = vsel %vm2079, %v2081, %v2077
      %v2083 = vmul.f32 1.0, %v2082
      %v2084 = vrcp.pop %v2012
      %v2085 = vmul.f32 %v2012, %v2084
      %v2086 = vsub.f32 1.0, %v2085
      %v2087 = vmul.f32 %v2084, %v2086
      %v2088 = vadd.f32 %v2084, %v2087
      %vm2089 = vweird.f32 %v2012
      %vm2090 = vweird.f32 %v2084
      %vm2091 = vmor %vm2089, %vm2090
      %v2092 = vsel %vm2091, %v2084, %v2088
      %v2093 = vand.u32 2147483647, %v2012
      %vm2094 = vcmp.eq.f32.partialorder %v2093, 8.507059e+37
      %v2095 = vand.u32 %v2012, 2147483648
      %v2096 = vor.u32 1.1754944e-38, %v2095
      %v2097 = vsel %vm2094, %v2096, %v2092
      %v2098 = vmul.f32 1.0, %v2097
      %v2099 = vrcp.pop %v2013
      %v2100 = vmul.f32 %v2013, %v2099
      %v2101 = vsub.f32 1.0, %v2100
      %v2102 = vmul.f32 %v2099, %v2101
      %v2103 = vadd.f32 %v2099, %v2102
      %vm2104 = vweird.f32 %v2013
      %vm2105 = vweird.f32 %v2099
      %vm2106 = vmor %vm2104, %vm2105
      %v2107 = vsel %vm2106, %v2099, %v2103
      %v2108 = vand.u32 2147483647, %v2013
      %vm2109 = vcmp.eq.f32.partialorder %v2108, 8.507059e+37
      %v2110 = vand.u32 %v2013, 2147483648
      %v2111 = vor.u32 1.1754944e-38, %v2110
      %v2112 = vsel %vm2109, %v2111, %v2107
      %v2113 = vmul.f32 1.0, %v2112
      %v2114 = vrcp.pop %v2014
      %v2115 = vmul.f32 %v2014, %v2114
      %v2116 = vsub.f32 1.0, %v2115
      %v2117 = vmul.f32 %v2114, %v2116
      %v2118 = vadd.f32 %v2114, %v2117
      %vm2119 = vweird.f32 %v2014
      %vm2120 = vweird.f32 %v2114
      %vm2121 = vmor %vm2119, %vm2120
      %v2122 = vsel %vm2121, %v2114, %v2118
      %v2123 = vand.u32 2147483647, %v2014
      %vm2124 = vcmp.eq.f32.partialorder %v2123, 8.507059e+37
      %v2125 = vand.u32 %v2014, 2147483648
      %v2126 = vor.u32 1.1754944e-38, %v2125
      %v2127 = vsel %vm2124, %v2126, %v2122
      %v2128 = vmul.f32 1.0, %v2127
      %v2129 = vrcp.pop %v2015
      %v2130 = vmul.f32 %v2015, %v2129
      %v2131 = vsub.f32 1.0, %v2130
      %v2132 = vmul.f32 %v2129, %v2131
      %v2133 = vadd.f32 %v2129, %v2132
      %vm2134 = vweird.f32 %v2015
      %vm2135 = vweird.f32 %v2129
      %vm2136 = vmor %vm2134, %vm2135
      %v2137 = vsel %vm2136, %v2129, %v2133
      %v2138 = vand.u32 2147483647, %v2015
      %vm2139 = vcmp.eq.f32.partialorder %v2138, 8.507059e+37
      %v2140 = vand.u32 %v2015, 2147483648
      %v2141 = vor.u32 1.1754944e-38, %v2140
      %v2142 = vsel %vm2139, %v2141, %v2137
      %v2143 = vmul.f32 1.0, %v2142
      %v2144 = vrcp.pop %v2016
      %v2145 = vmul.f32 %v2016, %v2144
      %v2146 = vsub.f32 1.0, %v2145
      %v2147 = vmul.f32 %v2144, %v2146
      %v2148 = vadd.f32 %v2144, %v2147
      %vm2149 = vweird.f32 %v2016
      %vm2150 = vweird.f32 %v2144
      %vm2151 = vmor %vm2149, %vm2150
      %v2152 = vsel %vm2151, %v2144, %v2148
      %v2153 = vand.u32 2147483647, %v2016
      %vm2154 = vcmp.eq.f32.partialorder %v2153, 8.507059e+37
      %v2155 = vand.u32 %v2016, 2147483648
      %v2156 = vor.u32 1.1754944e-38, %v2155
      %v2157 = vsel %vm2154, %v2156, %v2152
      %v2158 = vmul.f32 1.0, %v2157
      %v2159 = vrcp.pop %v2017
      %v2160 = vmul.f32 %v2017, %v2159
      %v2161 = vsub.f32 1.0, %v2160
      %v2162 = vmul.f32 %v2159, %v2161
      %v2163 = vadd.f32 %v2159, %v2162
      %vm2164 = vweird.f32 %v2017
      %vm2165 = vweird.f32 %v2159
      %vm2166 = vmor %vm2164, %vm2165
      %v2167 = vsel %vm2166, %v2159, %v2163
      %v2168 = vand.u32 2147483647, %v2017
      %vm2169 = vcmp.eq.f32.partialorder %v2168, 8.507059e+37
      %v2170 = vand.u32 %v2017, 2147483648
      %v2171 = vor.u32 1.1754944e-38, %v2170
      %v2172 = vsel %vm2169, %v2171, %v2167
      %v2173 = vmul.f32 1.0, %v2172
      %v2174 = vrcp.pop %v2018
      %v2175 = vmul.f32 %v2018, %v2174
      %v2176 = vsub.f32 1.0, %v2175
      %v2177 = vmul.f32 %v2174, %v2176
      %v2178 = vadd.f32 %v2174, %v2177
      %vm2179 = vweird.f32 %v2018
      %vm2180 = vweird.f32 %v2174
      %vm2181 = vmor %vm2179, %vm2180
      %v2182 = vsel %vm2181, %v2174, %v2178
      %v2183 = vand.u32 2147483647, %v2018
      %vm2184 = vcmp.eq.f32.partialorder %v2183, 8.507059e+37
      %v2185 = vand.u32 %v2018, 2147483648
      %v2186 = vor.u32 1.1754944e-38, %v2185
      %v2187 = vsel %vm2184, %v2186, %v2182
      %v2188 = vmul.f32 1.0, %v2187
      %v2189 = vrcp.pop %v2019
      %v2190 = vmul.f32 %v2019, %v2189
      %v2191 = vsub.f32 1.0, %v2190
      %v2192 = vmul.f32 %v2189, %v2191
      %v2193 = vadd.f32 %v2189, %v2192
      %vm2194 = vweird.f32 %v2019
      %vm2195 = vweird.f32 %v2189
      %vm2196 = vmor %vm2194, %vm2195
      %v2197 = vsel %vm2196, %v2189, %v2193
      %v2198 = vand.u32 2147483647, %v2019
      %vm2199 = vcmp.eq.f32.partialorder %v2198, 8.507059e+37
      %v2200 = vand.u32 %v2019, 2147483648
      %v2201 = vor.u32 1.1754944e-38, %v2200
      %v2202 = vsel %vm2199, %v2201, %v2197
      %v2203 = vmul.f32 1.0, %v2202
      %v2204 = vrcp.pop %v2020
      %v2205 = vmul.f32 %v2020, %v2204
      %v2206 = vsub.f32 1.0, %v2205
      %v2207 = vmul.f32 %v2204, %v2206
      %v2208 = vadd.f32 %v2204, %v2207
      %vm2209 = vweird.f32 %v2020
      %vm2210 = vweird.f32 %v2204
      %vm2211 = vmor %vm2209, %vm2210
      %v2212 = vsel %vm2211, %v2204, %v2208
      %v2213 = vand.u32 2147483647, %v2020
      %vm2214 = vcmp.eq.f32.partialorder %v2213, 8.507059e+37
      %v2215 = vand.u32 %v2020, 2147483648
      %v2216 = vor.u32 1.1754944e-38, %v2215
      %v2217 = vsel %vm2214, %v2216, %v2212
      %v2218 = vmul.f32 1.0, %v2217
      %v2219 = vrcp.pop %v2021
      %v2220 = vmul.f32 %v2021, %v2219
      %v2221 = vsub.f32 1.0, %v2220
      %v2222 = vmul.f32 %v2219, %v2221
      %v2223 = vadd.f32 %v2219, %v2222
      %vm2224 = vweird.f32 %v2021
      %vm2225 = vweird.f32 %v2219
      %vm2226 = vmor %vm2224, %vm2225
      %v2227 = vsel %vm2226, %v2219, %v2223
      %v2228 = vand.u32 2147483647, %v2021
      %vm2229 = vcmp.eq.f32.partialorder %v2228, 8.507059e+37
      %v2230 = vand.u32 %v2021, 2147483648
      %v2231 = vor.u32 1.1754944e-38, %v2230
      %v2232 = vsel %vm2229, %v2231, %v2227
      %v2233 = vmul.f32 1.0, %v2232
      %v2234 = vrcp.pop %v2022
      %v2235 = vmul.f32 %v2022, %v2234
      %v2236 = vsub.f32 1.0, %v2235
      %v2237 = vmul.f32 %v2234, %v2236
      %v2238 = vadd.f32 %v2234, %v2237
      %vm2239 = vweird.f32 %v2022
      %vm2240 = vweird.f32 %v2234
      %vm2241 = vmor %vm2239, %vm2240
      %v2242 = vsel %vm2241, %v2234, %v2238
      %v2243 = vand.u32 2147483647, %v2022
      %vm2244 = vcmp.eq.f32.partialorder %v2243, 8.507059e+37
      %v2245 = vand.u32 %v2022, 2147483648
      %v2246 = vor.u32 1.1754944e-38, %v2245
      %v2247 = vsel %vm2244, %v2246, %v2242
      %v2248 = vmul.f32 1.0, %v2247
      %v2249 = vrcp.pop %v2023
      %v2250 = vmul.f32 %v2023, %v2249
      %v2251 = vsub.f32 1.0, %v2250
      %v2252 = vmul.f32 %v2249, %v2251
      %v2253 = vadd.f32 %v2249, %v2252
      %vm2254 = vweird.f32 %v2023
      %vm2255 = vweird.f32 %v2249
      %vm2256 = vmor %vm2254, %vm2255
      %v2257 = vsel %vm2256, %v2249, %v2253
      %v2258 = vand.u32 2147483647, %v2023
      %vm2259 = vcmp.eq.f32.partialorder %v2258, 8.507059e+37
      %v2260 = vand.u32 %v2023, 2147483648
      %v2261 = vor.u32 1.1754944e-38, %v2260
      %v2262 = vsel %vm2259, %v2261, %v2257
      %v2263 = vmul.f32 1.0, %v2262
      %v2264 = vmul.f32 %v1944, %v2038
      %v2265 = vmul.f32 %v1945, %v2053
      %v2266 = vmul.f32 %v1946, %v2068
      %v2267 = vmul.f32 %v1947, %v2083
      %v2268 = vmul.f32 %v1948, %v2098
      %v2269 = vmul.f32 %v1949, %v2113
      %v2270 = vmul.f32 %v1950, %v2128
      %v2271 = vmul.f32 %v1951, %v2143
      %v2272 = vmul.f32 %v1952, %v2158
      %v2273 = vmul.f32 %v1953, %v2173
      %v2274 = vmul.f32 %v1954, %v2188
      %v2275 = vmul.f32 %v1955, %v2203
      %v2276 = vmul.f32 %v1956, %v2218
      %v2277 = vmul.f32 %v1957, %v2233
      %v2278 = vmul.f32 %v1958, %v2248
      %v2279 = vmul.f32 %v1959, %v2263
      %v2280 = vpack.c.bf16 %v2264, %v2264
      %v2281 = vpack.c.bf16 %v2265, %v2265
      %v2282 = vpack.c.bf16 %v2266, %v2266
      %v2283 = vpack.c.bf16 %v2267, %v2267
      %v2284 = vpack.c.bf16 %v2268, %v2268
      %v2285 = vpack.c.bf16 %v2269, %v2269
      %v2286 = vpack.c.bf16 %v2270, %v2270
      %v2287 = vpack.c.bf16 %v2271, %v2271
      %v2288 = vpack.c.bf16 %v2272, %v2272
      %v2289 = vpack.c.bf16 %v2273, %v2273
      %v2290 = vpack.c.bf16 %v2274, %v2274
      %v2291 = vpack.c.bf16 %v2275, %v2275
      %v2292 = vpack.c.bf16 %v2276, %v2276
      %v2293 = vpack.c.bf16 %v2277, %v2277
      %v2294 = vpack.c.bf16 %v2278, %v2278
      %v2295 = vpack.c.bf16 %v2279, %v2279
      %2296 = vst [vmem:[%s146] sm:$0xf] %v2280
      %2297 = vst [vmem:[%s146 + $0x4] sm:$0xf] %v2281
      %2298 = vst [vmem:[%s146 + $0x8] sm:$0xf] %v2282
      %2299 = vst [vmem:[%s146 + $0xc] sm:$0xf] %v2283
      %2300 = vst [vmem:[%s146 + $0x10] sm:$0xf] %v2284
      %2301 = vst [vmem:[%s146 + $0x14] sm:$0xf] %v2285
      %2302 = vst [vmem:[%s146 + $0x18] sm:$0xf] %v2286
      %2303 = vst [vmem:[%s146 + $0x1c] sm:$0xf] %v2287
      %2304 = vst [vmem:[%s146 + $0x20] sm:$0xf] %v2288
      %2305 = vst [vmem:[%s146 + $0x24] sm:$0xf] %v2289
      %2306 = vst [vmem:[%s146 + $0x28] sm:$0xf] %v2290
      %2307 = vst [vmem:[%s146 + $0x2c] sm:$0xf] %v2291
      %2308 = vst [vmem:[%s146 + $0x30] sm:$0xf] %v2292
      %2309 = vst [vmem:[%s146 + $0x34] sm:$0xf] %v2293
      %2310 = vst [vmem:[%s146 + $0x38] sm:$0xf] %v2294
      %2311 = vst [vmem:[%s146 + $0x3c] sm:$0xf] %v2295
      %s2312 = smul.u32 16, %s19
      %p2313 = scmp.lt.s32.totalorder %s18, 1
      %s2314 = scalar_select %p2313, %s18, 1
      %p2315 = scmp.lt.s32.totalorder %s2312, 31
      %s2316 = scalar_select %p2315, %s2312, 31
      %s2317 = smul.addr %s2314, 32
      %s2318 = sadd.s32 %s2316, %s2317
      %s2319 = smul.addr %s2318, 4
      %s2320 = scalar_lea.vmem %s3, %s2319
      // Predicated region
      $region75: #{conv_forward.1} parent=27 // pred_check
        %p2321 = pneg %p88
      $region76: #{conv_forward.1} parent=27 // pred_check_branch
        %2323 = sbr.rel (%p2321) target = $region78
      $region77: #{conv_forward.1} parent=27 // pred_region
        %s2324 = smul.u32 16, %s19
      $region78: #{conv_forward.1} parent=27 // pred_fallthru
        _
    $region28: #{conv_forward.1} parent=5 // pred_fallthru
      _
    %p2325 = scmp.le.s32.totalorder 2, %s9
    // Predicated region
    $region79: #{conv_forward.1} parent=5 // pred_check
      %p2326 = pneg %p2325
    $region80: #{conv_forward.1} parent=5 // pred_check_branch
      %2328 = sbr.rel (%p2326) target = $region82
    $region81: #{conv_forward.1} parent=5 // pred_region
      %s2329 = ssub.s32 %s9, 2
      // Predicated region
      $region83: #{conv_forward.1} parent=81 // pred_check
        %p2330 = pneg %p94
      $region84: #{conv_forward.1} parent=81 // pred_check_branch
        %2332 = sbr.rel (%p2330) target = $region86
      $region85: #{conv_forward.1} parent=81 // pred_region
        %s2333 = smul.u32 16, %s21
        %p2334 = scmp.lt.s32.totalorder %s20, 1
        %s2335 = scalar_select %p2334, %s20, 1
        %p2336 = scmp.lt.s32.totalorder %s2333, 31
        %s2337 = scalar_select %p2336, %s2333, 31
        %s2338 = smul.addr %s2335, 32
        %s2339 = sadd.s32 %s2337, %s2338
        %s2340 = smul.addr %s2339, 4
        %s2341 = scalar_lea.vmem %s3, %s2340
      $region86: #{conv_forward.1} parent=81 // pred_fallthru
        _
    $region82: #{conv_forward.1} parent=5 // pred_fallthru
      _
  $region6: #{conv_forward.1} parent=0 // loop_footer
    %s13 = sadd.s32 1, %s9
  $region7: #{conv_forward.1} parent=0 // loop_footer_branch
    %8 = sbr.rel target = $region3
  $region8: #{conv_forward.1} parent=0 // loop_exit
    _
  %2342 = vsyncmov [#allocation3]
  %s2343 = vpop.sfrf %2342
  %p2344 = scmp.eq.s32.totalorder %s2343, 0
  %p2345 = pneg %p2344
  %2347 = shalt.err (%p2345)
  %s2348 = scalar_lea.sflag [#allocation3], 1
  %2349 = vsyncmov %s2348
  %s2350 = vpop.sfrf %2349
  %p2351 = scmp.eq.s32.totalorder %s2350, 0
  %p2352 = pneg %p2351
  %2354 = shalt.err (%p2352)

</llo_original>
